<compile_context>
chip_gen: v7x
topology: tpu7x:2x2x1
jax: 0.10.0
libtpu: 0.0.40
codegen_flags: <defaults>
</compile_context>

<pallas_src>
import functools
import math

import jax
import jax.numpy as jnp
from jax.experimental import pallas as pl
from jax.experimental.pallas import tpu as pltpu


def mha_kernel(
    q_ref,      # (1, S, D)  f32
    k_ref,      # (1, S, D)  f32
    v_ref,      # (1, S, D)  f32
    mask_ref,   # (1, 1, S)  i32   key mask (1 = attend, 0 = masked)
    wq_ref, bq_ref,   # (D, D), (1, D)
    wk_ref, bk_ref,   # (D, D), (1, D)
    wv_ref, bv_ref,   # (D, D), (1, D)
    wo_ref, bo_ref,   # (D, D), (1, D)
    out_ref,    # (1, S, D)  f32
    *,
    heads,
    d_k,
):
    f32 = jnp.float32

    q_in = q_ref[0]          # (S, D)
    k_in = k_ref[0]          # (S, D)
    v_in = v_ref[0]          # (S, D)

    # ---- Q / K / V linear projections (dropout == identity) ----
    qp = jnp.dot(q_in, wq_ref[...], preferred_element_type=f32) + bq_ref[...]
    kp = jnp.dot(k_in, wk_ref[...], preferred_element_type=f32) + bk_ref[...]
    vp = jnp.dot(v_in, wv_ref[...], preferred_element_type=f32) + bv_ref[...]

    # Hoisted once per batch element: boolean key mask (1, S) broadcasting over
    # query rows, exact PyTorch masked_fill(-1e9) semantics.
    key_masked = mask_ref[0] == 0        # (1, S) bool
    neg = jnp.float32(-1e9)
    scale = jnp.float32(1.0 / math.sqrt(d_k))

    # ---- per-head scaled dot-product attention (heads is a small static int) ----
    head_outs = []
    for h in range(heads):
        lo = h * d_k
        q_h = qp[:, lo:lo + d_k]         # (S, d_k) lane-aligned slice
        k_h = kp[:, lo:lo + d_k]
        v_h = vp[:, lo:lo + d_k]

        # scores = q_h @ k_h^T / sqrt(d_k)
        scores = jax.lax.dot_general(
            q_h, k_h, (((1,), (1,)), ((), ())),
            preferred_element_type=f32) * scale            # (S, S)
        scores = jnp.where(key_masked, neg, scores)         # masked_fill

        # numerically-stable softmax over keys (f32 VPU/EUP math)
        m = jnp.max(scores, axis=-1, keepdims=True)
        p = jnp.exp(scores - m)
        l = jnp.sum(p, axis=-1, keepdims=True)
        p = p / l

        head_outs.append(jnp.dot(p, v_h, preferred_element_type=f32))  # (S, d_k)

    # concat heads along lanes (each slice is a 128-multiple -> cheap) + out proj
    concat = jnp.concatenate(head_outs, axis=-1)             # (S, D)
    out = jnp.dot(concat, wo_ref[...], preferred_element_type=f32) + bo_ref[...]
    out_ref[0] = out.astype(out_ref.dtype)


def init_params(key, d_model):
    """Linear weights stored pre-transposed as (in_features, out_features)."""
    ks = jax.random.split(key, 4)
    std = 0.05
    f32 = jnp.float32

    def w(k):
        return (std * jax.random.normal(k, (d_model, d_model))).astype(f32)

    return {
        "wq": w(ks[0]), "bq": jnp.zeros((1, d_model), f32),
        "wk": w(ks[1]), "bk": jnp.zeros((1, d_model), f32),
        "wv": w(ks[2]), "bv": jnp.zeros((1, d_model), f32),
        "wo": w(ks[3]), "bo": jnp.zeros((1, d_model), f32),
    }


def multi_head_attention(q, k, v, mask, params, heads):
    """q, k, v: (B, S, d_model); mask: (B, S) int (1 = attend, 0 = masked)."""
    B, S, D = q.shape
    assert D % heads == 0
    d_k = D // heads
    mask3 = mask.reshape(B, 1, S).astype(jnp.int32)

    seq_spec = pl.BlockSpec((1, S, D), lambda b: (b, 0, 0))
    mask_spec = pl.BlockSpec((1, 1, S), lambda b: (b, 0, 0))
    # Weights/biases: full-array blocks with constant index_map -> resident in
    # VMEM across grid iterations (no per-step re-DMA).
    w_spec = pl.BlockSpec((D, D), lambda b: (0, 0))
    b_spec = pl.BlockSpec((1, D), lambda b: (0, 0))

    out = pl.pallas_call(
        functools.partial(mha_kernel, heads=heads, d_k=d_k),
        out_shape=jax.ShapeDtypeStruct((B, S, D), q.dtype),
        grid_spec=pltpu.PrefetchScalarGridSpec(
            num_scalar_prefetch=0,
            grid=(B,),
            in_specs=[
                seq_spec, seq_spec, seq_spec, mask_spec,
                w_spec, b_spec,   # q_linear
                w_spec, b_spec,   # k_linear
                w_spec, b_spec,   # v_linear
                w_spec, b_spec,   # out
            ],
            out_specs=seq_spec,
        ),
        compiler_params=pltpu.CompilerParams(
            dimension_semantics=("parallel",)),
    )(
        q, k, v, mask3,
        params["wq"], params["bq"],
        params["wk"], params["bk"],
        params["wv"], params["bv"],
        params["wo"], params["bo"],
    )
    return out


def reference_mha(q, k, v, mask, p, heads):
    """Pure-JAX reference mirroring the PyTorch forward (inference mode)."""
    B, S, D = q.shape
    d_k = D // heads

    qp = q @ p["wq"] + p["bq"]
    kp = k @ p["wk"] + p["bk"]
    vp = v @ p["wv"] + p["bv"]

    def split(x):
        return x.reshape(B, S, heads, d_k).transpose(0, 2, 1, 3)  # (B, h, S, d_k)

    qh, kh, vh = split(qp), split(kp), split(vp)
    scores = jnp.einsum("bhqd,bhkd->bhqk", qh, kh) / math.sqrt(d_k)
    m = mask.reshape(B, 1, 1, S)
    scores = jnp.where(m == 0, -1e9, scores)
    attn = jax.nn.softmax(scores, axis=-1)
    out = jnp.einsum("bhqk,bhkd->bhqd", attn, vh)
    concat = out.transpose(0, 2, 1, 3).reshape(B, S, D)
    return concat @ p["wo"] + p["bo"]


if __name__ == "__main__":
    # Small demo shapes: d_k = d_model / heads = 128 -> lane-aligned head slices.
    B, S, heads, d_model = 2, 8, 2, 256

    key = jax.random.PRNGKey(0)
    kq, kk, kv, km, kp = jax.random.split(key, 5)

    q = jax.random.normal(kq, (B, S, d_model), jnp.float32)
    k = jax.random.normal(kk, (B, S, d_model), jnp.float32)
    v = jax.random.normal(kv, (B, S, d_model), jnp.float32)
    mask = (jax.random.uniform(km, (B, S)) > 0.3).astype(jnp.int32)
    mask = mask.at[:, 0].set(1)  # at least one attendable key per row

    params = init_params(kp, d_model)

    out = multi_head_attention(q, k, v, mask, params, heads)
    out = jax.block_until_ready(out)

    ref = reference_mha(q, k, v, mask, params, heads)

    assert out.shape == (B, S, d_model)
    assert jnp.allclose(out, ref, atol=1e-3, rtol=1e-3), float(
        jnp.max(jnp.abs(out - ref)))

    print("KERNEL_OK")
</pallas_src>

<mosaic_0001>
module attributes {stable_mosaic.version = 11 : i64} {
  func.func @mha_kernel(%arg0: i32, %arg1: memref<1x8x256xf32, #tpu.memory_space<vmem>>, %arg2: memref<1x8x256xf32, #tpu.memory_space<vmem>>, %arg3: memref<1x8x256xf32, #tpu.memory_space<vmem>>, %arg4: memref<1x1x8xi32, #tpu.memory_space<vmem>>, %arg5: memref<256x256xf32, #tpu.memory_space<vmem>>, %arg6: memref<1x256xf32, #tpu.memory_space<vmem>>, %arg7: memref<256x256xf32, #tpu.memory_space<vmem>>, %arg8: memref<1x256xf32, #tpu.memory_space<vmem>>, %arg9: memref<256x256xf32, #tpu.memory_space<vmem>>, %arg10: memref<1x256xf32, #tpu.memory_space<vmem>>, %arg11: memref<256x256xf32, #tpu.memory_space<vmem>>, %arg12: memref<1x256xf32, #tpu.memory_space<vmem>>, %arg13: memref<1x8x256xf32, #tpu.memory_space<vmem>>) attributes {dimension_semantics = [#tpu.dimension_semantics<parallel>], iteration_bounds = array<i64: 2>, scalar_prefetch = 0 : i64, scratch_operands = 0 : i64, tpu.core_type = #tpu.core_type<tc>, window_params = [{transform_indices = @transform_0, window_bounds = array<i64: 1, 8, 256>}, {transform_indices = @transform_1, window_bounds = array<i64: 1, 8, 256>}, {transform_indices = @transform_2, window_bounds = array<i64: 1, 8, 256>}, {transform_indices = @transform_3, window_bounds = array<i64: 1, 1, 8>}, {pipeline_mode = #tpu.pipeline_mode<synchronous>, transform_indices = @transform_4, window_bounds = array<i64: 256, 256>}, {pipeline_mode = #tpu.pipeline_mode<synchronous>, transform_indices = @transform_5, window_bounds = array<i64: 1, 256>}, {pipeline_mode = #tpu.pipeline_mode<synchronous>, transform_indices = @transform_6, window_bounds = array<i64: 256, 256>}, {pipeline_mode = #tpu.pipeline_mode<synchronous>, transform_indices = @transform_7, window_bounds = array<i64: 1, 256>}, {pipeline_mode = #tpu.pipeline_mode<synchronous>, transform_indices = @transform_8, window_bounds = array<i64: 256, 256>}, {pipeline_mode = #tpu.pipeline_mode<synchronous>, transform_indices = @transform_9, window_bounds = array<i64: 1, 256>}, {pipeline_mode = #tpu.pipeline_mode<synchronous>, transform_indices = @transform_10, window_bounds = array<i64: 256, 256>}, {pipeline_mode = #tpu.pipeline_mode<synchronous>, transform_indices = @transform_11, window_bounds = array<i64: 1, 256>}, {transform_indices = @transform_12, window_bounds = array<i64: 1, 8, 256>}]} {
    %c0 = arith.constant 0 : index
    %c0_0 = arith.constant 0 : index
    %c0_1 = arith.constant 0 : index
    %0 = vector.load %arg1[%c0, %c0_0, %c0_1] : memref<1x8x256xf32, #tpu.memory_space<vmem>>, vector<1x8x256xf32>
    %1 = vector.shape_cast %0 : vector<1x8x256xf32> to vector<8x256xf32>
    %c0_2 = arith.constant 0 : index
    %c0_3 = arith.constant 0 : index
    %c0_4 = arith.constant 0 : index
    %2 = vector.load %arg2[%c0_2, %c0_3, %c0_4] : memref<1x8x256xf32, #tpu.memory_space<vmem>>, vector<1x8x256xf32>
    %3 = vector.shape_cast %2 : vector<1x8x256xf32> to vector<8x256xf32>
    %c0_5 = arith.constant 0 : index
    %c0_6 = arith.constant 0 : index
    %c0_7 = arith.constant 0 : index
    %4 = vector.load %arg3[%c0_5, %c0_6, %c0_7] : memref<1x8x256xf32, #tpu.memory_space<vmem>>, vector<1x8x256xf32>
    %5 = vector.shape_cast %4 : vector<1x8x256xf32> to vector<8x256xf32>
    %c0_8 = arith.constant 0 : index
    %c0_9 = arith.constant 0 : index
    %6 = vector.load %arg5[%c0_8, %c0_9] : memref<256x256xf32, #tpu.memory_space<vmem>>, vector<256x256xf32>
    %cst = arith.constant dense<0.000000e+00> : vector<8x256xf32>
    %7 = tpu.matmul %1, %6, %cst {dimension_numbers = #tpu.dot_dimension_numbers<[1], [0], [0], [1], [0, 0, 1, 1], [], []>} : vector<8x256xf32>, vector<256x256xf32>, vector<8x256xf32> -> vector<8x256xf32>
    %c0_10 = arith.constant 0 : index
    %c0_11 = arith.constant 0 : index
    %8 = vector.load %arg6[%c0_10, %c0_11] : memref<1x256xf32, #tpu.memory_space<vmem>>, vector<1x256xf32>
    %9 = vector.broadcast %8 : vector<1x256xf32> to vector<8x256xf32>
    %10 = arith.addf %7, %9 : vector<8x256xf32>
    %c0_12 = arith.constant 0 : index
    %c0_13 = arith.constant 0 : index
    %11 = vector.load %arg7[%c0_12, %c0_13] : memref<256x256xf32, #tpu.memory_space<vmem>>, vector<256x256xf32>
    %cst_14 = arith.constant dense<0.000000e+00> : vector<8x256xf32>
    %12 = tpu.matmul %3, %11, %cst_14 {dimension_numbers = #tpu.dot_dimension_numbers<[1], [0], [0], [1], [0, 0, 1, 1], [], []>} : vector<8x256xf32>, vector<256x256xf32>, vector<8x256xf32> -> vector<8x256xf32>
    %c0_15 = arith.constant 0 : index
    %c0_16 = arith.constant 0 : index
    %13 = vector.load %arg8[%c0_15, %c0_16] : memref<1x256xf32, #tpu.memory_space<vmem>>, vector<1x256xf32>
    %14 = vector.broadcast %13 : vector<1x256xf32> to vector<8x256xf32>
    %15 = arith.addf %12, %14 : vector<8x256xf32>
    %c0_17 = arith.constant 0 : index
    %c0_18 = arith.constant 0 : index
    %16 = vector.load %arg9[%c0_17, %c0_18] : memref<256x256xf32, #tpu.memory_space<vmem>>, vector<256x256xf32>
    %cst_19 = arith.constant dense<0.000000e+00> : vector<8x256xf32>
    %17 = tpu.matmul %5, %16, %cst_19 {dimension_numbers = #tpu.dot_dimension_numbers<[1], [0], [0], [1], [0, 0, 1, 1], [], []>} : vector<8x256xf32>, vector<256x256xf32>, vector<8x256xf32> -> vector<8x256xf32>
    %c0_20 = arith.constant 0 : index
    %c0_21 = arith.constant 0 : index
    %18 = vector.load %arg10[%c0_20, %c0_21] : memref<1x256xf32, #tpu.memory_space<vmem>>, vector<1x256xf32>
    %19 = vector.broadcast %18 : vector<1x256xf32> to vector<8x256xf32>
    %20 = arith.addf %17, %19 : vector<8x256xf32>
    %c0_22 = arith.constant 0 : index
    %c0_23 = arith.constant 0 : index
    %c0_24 = arith.constant 0 : index
    %21 = vector.load %arg4[%c0_22, %c0_23, %c0_24] : memref<1x1x8xi32, #tpu.memory_space<vmem>>, vector<1x1x8xi32>
    %22 = vector.shape_cast %21 : vector<1x1x8xi32> to vector<1x8xi32>
    %c0_i32 = arith.constant 0 : i32
    %23 = vector.broadcast %c0_i32 : i32 to vector<1x8xi32>
    %24 = arith.cmpi eq, %22, %23 : vector<1x8xi32>
    %25 = vector.extract_strided_slice %10 {offsets = [0, 0], sizes = [8, 128], strides = [1, 1]} : vector<8x256xf32> to vector<8x128xf32>
    %26 = vector.extract_strided_slice %15 {offsets = [0, 0], sizes = [8, 128], strides = [1, 1]} : vector<8x256xf32> to vector<8x128xf32>
    %27 = vector.extract_strided_slice %20 {offsets = [0, 0], sizes = [8, 128], strides = [1, 1]} : vector<8x256xf32> to vector<8x128xf32>
    %cst_25 = arith.constant dense<0.000000e+00> : vector<8x8xf32>
    %28 = tpu.matmul %25, %26, %cst_25 {dimension_numbers = #tpu.dot_dimension_numbers<[1], [1], [0], [0], [0, 0, 1, 0], [], []>} : vector<8x128xf32>, vector<8x128xf32>, vector<8x8xf32> -> vector<8x8xf32>
    %cst_26 = arith.constant 0.0883883461 : f32
    %29 = vector.broadcast %cst_26 : f32 to vector<8x8xf32>
    %30 = arith.mulf %28, %29 : vector<8x8xf32>
    %cst_27 = arith.constant -1.000000e+09 : f32
    %31 = vector.shape_cast %24 : vector<1x8xi1> to vector<1x8xi1>
    %32 = vector.broadcast %31 : vector<1x8xi1> to vector<8x8xi1>
    %33 = vector.broadcast %cst_27 : f32 to vector<8x8xf32>
    %34 = arith.select %32, %33, %30 : vector<8x8xi1>, vector<8x8xf32>
    %cst_28 = arith.constant dense<0xFF800000> : vector<8xf32>
    %35 = vector.multi_reduction <maximumf>, %34, %cst_28 [1] : vector<8x8xf32> to vector<8xf32>
    %36 = vector.shape_cast %35 : vector<8xf32> to vector<8x1xf32>
    %37 = vector.broadcast %36 : vector<8x1xf32> to vector<8x8xf32>
    %38 = arith.subf %34, %37 : vector<8x8xf32>
    %39 = math.exp %38 : vector<8x8xf32>
    %cst_29 = arith.constant dense<0.000000e+00> : vector<8xf32>
    %40 = vector.multi_reduction <add>, %39, %cst_29 [1] : vector<8x8xf32> to vector<8xf32>
    %41 = vector.shape_cast %40 : vector<8xf32> to vector<8x1xf32>
    %42 = vector.broadcast %41 : vector<8x1xf32> to vector<8x8xf32>
    %43 = arith.divf %39, %42 : vector<8x8xf32>
    %cst_30 = arith.constant dense<0.000000e+00> : vector<8x128xf32>
    %44 = tpu.matmul %43, %27, %cst_30 {dimension_numbers = #tpu.dot_dimension_numbers<[1], [0], [0], [1], [0, 0, 1, 1], [], []>} : vector<8x8xf32>, vector<8x128xf32>, vector<8x128xf32> -> vector<8x128xf32>
    %45 = vector.extract_strided_slice %10 {offsets = [0, 128], sizes = [8, 128], strides = [1, 1]} : vector<8x256xf32> to vector<8x128xf32>
    %46 = vector.extract_strided_slice %15 {offsets = [0, 128], sizes = [8, 128], strides = [1, 1]} : vector<8x256xf32> to vector<8x128xf32>
    %47 = vector.extract_strided_slice %20 {offsets = [0, 128], sizes = [8, 128], strides = [1, 1]} : vector<8x256xf32> to vector<8x128xf32>
    %cst_31 = arith.constant dense<0.000000e+00> : vector<8x8xf32>
    %48 = tpu.matmul %45, %46, %cst_31 {dimension_numbers = #tpu.dot_dimension_numbers<[1], [1], [0], [0], [0, 0, 1, 0], [], []>} : vector<8x128xf32>, vector<8x128xf32>, vector<8x8xf32> -> vector<8x8xf32>
    %cst_32 = arith.constant 0.0883883461 : f32
    %49 = vector.broadcast %cst_32 : f32 to vector<8x8xf32>
    %50 = arith.mulf %48, %49 : vector<8x8xf32>
    %cst_33 = arith.constant -1.000000e+09 : f32
    %51 = vector.shape_cast %24 : vector<1x8xi1> to vector<1x8xi1>
    %52 = vector.broadcast %51 : vector<1x8xi1> to vector<8x8xi1>
    %53 = vector.broadcast %cst_33 : f32 to vector<8x8xf32>
    %54 = arith.select %52, %53, %50 : vector<8x8xi1>, vector<8x8xf32>
    %cst_34 = arith.constant dense<0xFF800000> : vector<8xf32>
    %55 = vector.multi_reduction <maximumf>, %54, %cst_34 [1] : vector<8x8xf32> to vector<8xf32>
    %56 = vector.shape_cast %55 : vector<8xf32> to vector<8x1xf32>
    %57 = vector.broadcast %56 : vector<8x1xf32> to vector<8x8xf32>
    %58 = arith.subf %54, %57 : vector<8x8xf32>
    %59 = math.exp %58 : vector<8x8xf32>
    %cst_35 = arith.constant dense<0.000000e+00> : vector<8xf32>
    %60 = vector.multi_reduction <add>, %59, %cst_35 [1] : vector<8x8xf32> to vector<8xf32>
    %61 = vector.shape_cast %60 : vector<8xf32> to vector<8x1xf32>
    %62 = vector.broadcast %61 : vector<8x1xf32> to vector<8x8xf32>
    %63 = arith.divf %59, %62 : vector<8x8xf32>
    %cst_36 = arith.constant dense<0.000000e+00> : vector<8x128xf32>
    %64 = tpu.matmul %63, %47, %cst_36 {dimension_numbers = #tpu.dot_dimension_numbers<[1], [0], [0], [1], [0, 0, 1, 1], [], []>} : vector<8x8xf32>, vector<8x128xf32>, vector<8x128xf32> -> vector<8x128xf32>
    %65 = tpu.concatenate %44, %64 in 1 : vector<8x128xf32>, vector<8x128xf32> -> vector<8x256xf32>
    %c0_37 = arith.constant 0 : index
    %c0_38 = arith.constant 0 : index
    %66 = vector.load %arg11[%c0_37, %c0_38] : memref<256x256xf32, #tpu.memory_space<vmem>>, vector<256x256xf32>
    %cst_39 = arith.constant dense<0.000000e+00> : vector<8x256xf32>
    %67 = tpu.matmul %65, %66, %cst_39 {dimension_numbers = #tpu.dot_dimension_numbers<[1], [0], [0], [1], [0, 0, 1, 1], [], []>} : vector<8x256xf32>, vector<256x256xf32>, vector<8x256xf32> -> vector<8x256xf32>
    %c0_40 = arith.constant 0 : index
    %c0_41 = arith.constant 0 : index
    %68 = vector.load %arg12[%c0_40, %c0_41] : memref<1x256xf32, #tpu.memory_space<vmem>>, vector<1x256xf32>
    %69 = vector.broadcast %68 : vector<1x256xf32> to vector<8x256xf32>
    %70 = arith.addf %67, %69 : vector<8x256xf32>
    %c0_42 = arith.constant 0 : index
    %c0_43 = arith.constant 0 : index
    %c0_44 = arith.constant 0 : index
    %71 = vector.load %arg13[%c0_42, %c0_43, %c0_44] : memref<1x8x256xf32, #tpu.memory_space<vmem>>, vector<1x8x256xf32>
    %72 = vector.shape_cast %71 : vector<1x8x256xf32> to vector<8x256xf32>
    %73 = vector.shape_cast %70 : vector<8x256xf32> to vector<1x8x256xf32>
    tpu.vector_store %arg13[%c0_42, %c0_43, %c0_44], %73 {strides = array<i32>} : memref<1x8x256xf32, #tpu.memory_space<vmem>>, vector<1x8x256xf32>,
    return
  }
  func.func @transform_0(%arg0: i32) -> (i32, i32, i32) {
    %c0_i32 = arith.constant 0 : i32
    %c0_i32_0 = arith.constant 0 : i32
    %c0_i32_1 = arith.constant 0 : i32
    return %arg0, %c0_i32, %c0_i32_0 : i32, i32, i32
  }
  func.func @transform_1(%arg0: i32) -> (i32, i32, i32) {
    %c0_i32 = arith.constant 0 : i32
    %c0_i32_0 = arith.constant 0 : i32
    %c0_i32_1 = arith.constant 0 : i32
    return %arg0, %c0_i32, %c0_i32_0 : i32, i32, i32
  }
  func.func @transform_2(%arg0: i32) -> (i32, i32, i32) {
    %c0_i32 = arith.constant 0 : i32
    %c0_i32_0 = arith.constant 0 : i32
    %c0_i32_1 = arith.constant 0 : i32
    return %arg0, %c0_i32, %c0_i32_0 : i32, i32, i32
  }
  func.func @transform_3(%arg0: i32) -> (i32, i32, i32) {
    %c0_i32 = arith.constant 0 : i32
    %c0_i32_0 = arith.constant 0 : i32
    %c0_i32_1 = arith.constant 0 : i32
    return %arg0, %c0_i32, %c0_i32_0 : i32, i32, i32
  }
  func.func @transform_4(%arg0: i32) -> (i32, i32) {
    %c0_i32 = arith.constant 0 : i32
    %c0_i32_0 = arith.constant 0 : i32
    %c0_i32_1 = arith.constant 0 : i32
    return %c0_i32, %c0_i32_0 : i32, i32
  }
  func.func @transform_5(%arg0: i32) -> (i32, i32) {
    %c0_i32 = arith.constant 0 : i32
    %c0_i32_0 = arith.constant 0 : i32
    %c0_i32_1 = arith.constant 0 : i32
    return %c0_i32, %c0_i32_0 : i32, i32
  }
  func.func @transform_6(%arg0: i32) -> (i32, i32) {
    %c0_i32 = arith.constant 0 : i32
    %c0_i32_0 = arith.constant 0 : i32
    %c0_i32_1 = arith.constant 0 : i32
    return %c0_i32, %c0_i32_0 : i32, i32
  }
  func.func @transform_7(%arg0: i32) -> (i32, i32) {
    %c0_i32 = arith.constant 0 : i32
    %c0_i32_0 = arith.constant 0 : i32
    %c0_i32_1 = arith.constant 0 : i32
    return %c0_i32, %c0_i32_0 : i32, i32
  }
  func.func @transform_8(%arg0: i32) -> (i32, i32) {
    %c0_i32 = arith.constant 0 : i32
    %c0_i32_0 = arith.constant 0 : i32
    %c0_i32_1 = arith.constant 0 : i32
    return %c0_i32, %c0_i32_0 : i32, i32
  }
  func.func @transform_9(%arg0: i32) -> (i32, i32) {
    %c0_i32 = arith.constant 0 : i32
    %c0_i32_0 = arith.constant 0 : i32
    %c0_i32_1 = arith.constant 0 : i32
    return %c0_i32, %c0_i32_0 : i32, i32
  }
  func.func @transform_10(%arg0: i32) -> (i32, i32) {
    %c0_i32 = arith.constant 0 : i32
    %c0_i32_0 = arith.constant 0 : i32
    %c0_i32_1 = arith.constant 0 : i32
    return %c0_i32, %c0_i32_0 : i32, i32
  }
  func.func @transform_11(%arg0: i32) -> (i32, i32) {
    %c0_i32 = arith.constant 0 : i32
    %c0_i32_0 = arith.constant 0 : i32
    %c0_i32_1 = arith.constant 0 : i32
    return %c0_i32, %c0_i32_0 : i32, i32
  }
  func.func @transform_12(%arg0: i32) -> (i32, i32, i32) {
    %c0_i32 = arith.constant 0 : i32
    %c0_i32_0 = arith.constant 0 : i32
    %c0_i32_1 = arith.constant 0 : i32
    return %arg0, %c0_i32, %c0_i32_0 : i32, i32, i32
  }
}

</mosaic_0001>

<llo_original>
// kernel: tpu_custom_call.1
$region0: #{tpu_custom_call.1}
  #allocation0 [shape = 'u32[]', space=smem, size = 0x4, offset = 0x4, fixed_abs, tag = 'smem constant byte address 0x4 - core index']
  #allocation1 [shape = 'u32[144,128]{1,0:T(1,128)}', space=vmem, size = 0x12000, scoped, tag = 'internal scratch']
  %s0 = inlined_call_operand.hbm [shape: f32[2,8,256], index: 0, kind: input, shape index: {}]
  %s1 = inlined_call_operand.hbm [shape: f32[2,8,256], index: 1, kind: input, shape index: {}]
  %s2 = inlined_call_operand.hbm [shape: f32[2,8,256], index: 2, kind: input, shape index: {}]
  %s3 = inlined_call_operand.vmem [shape: s32[2,1,8], index: 3, kind: input, shape index: {}]
  %s4 = inlined_call_operand.hbm [shape: f32[256,256], index: 4, kind: input, shape index: {}]
  %s5 = inlined_call_operand.vmem [shape: f32[1,256], index: 5, kind: input, shape index: {}]
  %s6 = inlined_call_operand.hbm [shape: f32[256,256], index: 6, kind: input, shape index: {}]
  %s7 = inlined_call_operand.vmem [shape: f32[1,256], index: 7, kind: input, shape index: {}]
  %s8 = inlined_call_operand.hbm [shape: f32[256,256], index: 8, kind: input, shape index: {}]
  %s9 = inlined_call_operand.vmem [shape: f32[1,256], index: 9, kind: input, shape index: {}]
  %s10 = inlined_call_operand.hbm [shape: f32[256,256], index: 10, kind: input, shape index: {}]
  %s11 = inlined_call_operand.vmem [shape: f32[1,256], index: 11, kind: input, shape index: {}]
  %s12 = inlined_call_operand.hbm [shape: f32[2,8,256], index: 12, kind: output, shape index: {}]
  %s13 = sld [smem:[#allocation0]]
  $region109: #{tpu_custom_call.1} parent=0
    _
  %s15 = ssub.s32 1, %s13
  %s16 = scalar_select 0, %s15, %s13
  $region1: #{tpu_custom_call.1} parent=0
    #allocation2 [shape = 'u8[16384]{0}', space=vmem, size = 0x4000, scoped, tag = 'input window, operand 0']
    #allocation3 [shape = 's32[2]{0}', space=sflag, size = 0x8, scoped, tag = 'scoped memory for tpu_custom_call.1']
    #allocation4 [shape = 's32[2]{0}', space=sflag, size = 0x8, scoped, tag = 'scoped memory for tpu_custom_call.1']
    #allocation5 [shape = 'u8[16384]{0}', space=vmem, size = 0x4000, scoped, tag = 'input window, operand 1']
    #allocation6 [shape = 's32[2]{0}', space=sflag, size = 0x8, scoped, tag = 'scoped memory for tpu_custom_call.1']
    #allocation7 [shape = 'u8[16384]{0}', space=vmem, size = 0x4000, scoped, tag = 'input window, operand 2']
    #allocation8 [shape = 'u8[262144]{0}', space=vmem, size = 0x40000, scoped, tag = 'input window, operand 4, single buffered']
    #allocation9 [shape = 's32[1]{0}', space=sflag, size = 0x4, scoped, tag = 'scoped memory for tpu_custom_call.1']
    #allocation10 [shape = 'u8[262144]{0}', space=vmem, size = 0x40000, scoped, tag = 'input window, operand 6, single buffered']
    #allocation11 [shape = 'u8[262144]{0}', space=vmem, size = 0x40000, scoped, tag = 'input window, operand 8, single buffered']
    #allocation12 [shape = 's32[1]{0}', space=sflag, size = 0x4, scoped, tag = 'scoped memory for tpu_custom_call.1']
    #allocation13 [shape = 'u8[262144]{0}', space=vmem, size = 0x40000, scoped, tag = 'input window, operand 10, single buffered']
    #allocation14 [shape = 'u8[16384]{0}', space=vmem, size = 0x4000, scoped, tag = 'output window, operand 0']
    %17 = vsyncpa [#allocation3], 0
    %s18 = scalar_lea.sflag [#allocation3], 1
    %19 = vsyncpa %s18, 0
    %20 = vsyncpa [#allocation6], 0
    %s21 = scalar_lea.sflag [#allocation6], 1
    %22 = vsyncpa %s21, 0
    %23 = vsyncpa [#allocation9], 0
    %24 = vsyncpa [#allocation12], 0
    %25 = vsyncpa [#allocation4], 0
    %s26 = scalar_lea.sflag [#allocation4], 1
    %27 = vsyncpa %s26, 0
    loop: start=0, step=1, limit=4
    $region2: #{tpu_custom_call.1} parent=1 // loop_pre_header
      _
    $region3: #{tpu_custom_call.1} parent=1 // loop_header
      %s29 = sphi 0, %s33
      %p30 = scmp.ge.s32.totalorder %s29, 4
      %s39 = sphi 0, %s41
      %s42 = sphi 0, %s39
      %s43 = sphi 0, %s42
      %s59 = sphi 0, %s43
      %s65 = sphi 0, %s67
      %s68 = sphi 0, %s65
      %s69 = sphi 0, %s68
      %s85 = sphi 0, %s69
      %s91 = sphi 0, %s93
      %s94 = sphi 0, %s91
      %s95 = sphi 0, %s94
      %s111 = sphi 0, %s95
      %s117 = sphi 0, %s119
      %s120 = sphi 0, %s117
      %s121 = sphi 0, %s120
      %s137 = sphi 0, %s121
      %s141 = sphi 0, %s141
      %s143 = sphi 0, %s141
      %s144 = sphi 0, %s143
      %s158 = sphi 0, %s144
      %s162 = sphi 0, %s162
      %s164 = sphi 0, %s162
      %s165 = sphi 0, %s164
      %s179 = sphi 0, %s165
      %s183 = sphi 0, %s183
      %s185 = sphi 0, %s183
      %s186 = sphi 0, %s185
      %s200 = sphi 0, %s186
      %s204 = sphi 0, %s204
      %s206 = sphi 0, %s204
      %s207 = sphi 0, %s206
      %s221 = sphi 0, %s207
      %s225 = sphi 0, %s225
      %s227 = sphi 0, %s225
      %s228 = sphi 0, %s227
      %s242 = sphi 0, %s228
      %s246 = sphi 0, %s246
      %s248 = sphi 0, %s246
      %s249 = sphi 0, %s248
      %s263 = sphi 0, %s249
      %s267 = sphi 0, %s267
      %s269 = sphi 0, %s267
      %s270 = sphi 0, %s269
      %s284 = sphi 0, %s270
      %s288 = sphi 0, %s288
      %s290 = sphi 0, %s288
      %s291 = sphi 0, %s290
      %s305 = sphi 0, %s291
      %s311 = sphi 0, %s313
      %s314 = sphi 0, %s311
      %s315 = sphi 0, %s314
      %s331 = sphi 0, %s315
    $region4: #{tpu_custom_call.1} parent=1 // loop_header_branch
      %32 = sbr.rel (%p30) target = $region8
    $region5: #{tpu_custom_call.1} parent=1 // loop_body
      %s34 = ssub.s32 %s29, 1
      %s35 = ssub.s32 %s29, 2
      %s36 = sadd.s32 %s29, 1
      %s37 = ssub.s32 %s29, %s36
      %p38 = scmp.eq.s32.totalorder %s37, 0
      %s40 = sadd.s32 %s39, 1
      %s41 = scalar_select %p38, %s39, %s40
      %p44 = pneg %p38
      %p45 = scmp.eq.s32.totalorder %s29, 1
      %p46 = por %p44, %p45
      %p47 = scmp.ne.s32.totalorder %s39, %s42
      %p48 = scmp.eq.s32.totalorder %s29, 0
      %p49 = por %p47, %p48
      %p50 = scmp.ne.s32.totalorder %s39, %s42
      %p51 = scmp.eq.s32.totalorder %s34, 1
      %p52 = por %p50, %p51
      %p53 = scmp.ne.s32.totalorder %s42, %s43
      %p54 = scmp.eq.s32.totalorder %s34, 0
      %p55 = por %p53, %p54
      %p56 = scmp.ne.s32.totalorder %s42, %s43
      %p57 = scmp.eq.s32.totalorder %s35, 1
      %p58 = por %p56, %p57
      %p60 = scmp.ne.s32.totalorder %s43, %s59
      %p61 = scmp.eq.s32.totalorder %s35, 0
      %p62 = por %p60, %p61
      %s63 = ssub.s32 %s29, %s36
      %p64 = scmp.eq.s32.totalorder %s63, 0
      %s66 = sadd.s32 %s65, 1
      %s67 = scalar_select %p64, %s65, %s66
      %p70 = pneg %p64
      %p71 = scmp.eq.s32.totalorder %s29, 1
      %p72 = por %p70, %p71
      %p73 = scmp.ne.s32.totalorder %s65, %s68
      %p74 = scmp.eq.s32.totalorder %s29, 0
      %p75 = por %p73, %p74
      %p76 = scmp.ne.s32.totalorder %s65, %s68
      %p77 = scmp.eq.s32.totalorder %s34, 1
      %p78 = por %p76, %p77
      %p79 = scmp.ne.s32.totalorder %s68, %s69
      %p80 = scmp.eq.s32.totalorder %s34, 0
      %p81 = por %p79, %p80
      %p82 = scmp.ne.s32.totalorder %s68, %s69
      %p83 = scmp.eq.s32.totalorder %s35, 1
      %p84 = por %p82, %p83
      %p86 = scmp.ne.s32.totalorder %s69, %s85
      %p87 = scmp.eq.s32.totalorder %s35, 0
      %p88 = por %p86, %p87
      %s89 = ssub.s32 %s29, %s36
      %p90 = scmp.eq.s32.totalorder %s89, 0
      %s92 = sadd.s32 %s91, 1
      %s93 = scalar_select %p90, %s91, %s92
      %p96 = pneg %p90
      %p97 = scmp.eq.s32.totalorder %s29, 1
      %p98 = por %p96, %p97
      %p99 = scmp.ne.s32.totalorder %s91, %s94
      %p100 = scmp.eq.s32.totalorder %s29, 0
      %p101 = por %p99, %p100
      %p102 = scmp.ne.s32.totalorder %s91, %s94
      %p103 = scmp.eq.s32.totalorder %s34, 1
      %p104 = por %p102, %p103
      %p105 = scmp.ne.s32.totalorder %s94, %s95
      %p106 = scmp.eq.s32.totalorder %s34, 0
      %p107 = por %p105, %p106
      %p108 = scmp.ne.s32.totalorder %s94, %s95
      %p109 = scmp.eq.s32.totalorder %s35, 1
      %p110 = por %p108, %p109
      %p112 = scmp.ne.s32.totalorder %s95, %s111
      %p113 = scmp.eq.s32.totalorder %s35, 0
      %p114 = por %p112, %p113
      %s115 = ssub.s32 %s29, %s36
      %p116 = scmp.eq.s32.totalorder %s115, 0
      %s118 = sadd.s32 %s117, 1
      %s119 = scalar_select %p116, %s117, %s118
      %p122 = pneg %p116
      %p123 = scmp.eq.s32.totalorder %s29, 1
      %p124 = por %p122, %p123
      %p125 = scmp.ne.s32.totalorder %s117, %s120
      %p126 = scmp.eq.s32.totalorder %s29, 0
      %p127 = por %p125, %p126
      %p128 = scmp.ne.s32.totalorder %s117, %s120
      %p129 = scmp.eq.s32.totalorder %s34, 1
      %p130 = por %p128, %p129
      %p131 = scmp.ne.s32.totalorder %s120, %s121
      %p132 = scmp.eq.s32.totalorder %s34, 0
      %p133 = por %p131, %p132
      %p134 = scmp.ne.s32.totalorder %s120, %s121
      %p135 = scmp.eq.s32.totalorder %s35, 1
      %p136 = por %p134, %p135
      %p138 = scmp.ne.s32.totalorder %s121, %s137
      %p139 = scmp.eq.s32.totalorder %s35, 0
      %p140 = por %p138, %p139
      %s142 = sadd.s32 %s141, 1
      %p145 = scmp.eq.s32.totalorder %s29, 1
      %p146 = scmp.ne.s32.totalorder %s141, %s143
      %p147 = scmp.eq.s32.totalorder %s29, 0
      %p148 = por %p146, %p147
      %p149 = scmp.ne.s32.totalorder %s141, %s143
      %p150 = scmp.eq.s32.totalorder %s34, 1
      %p151 = por %p149, %p150
      %p152 = scmp.ne.s32.totalorder %s143, %s144
      %p153 = scmp.eq.s32.totalorder %s34, 0
      %p154 = por %p152, %p153
      %p155 = scmp.ne.s32.totalorder %s143, %s144
      %p156 = scmp.eq.s32.totalorder %s35, 1
      %p157 = por %p155, %p156
      %p159 = scmp.ne.s32.totalorder %s144, %s158
      %p160 = scmp.eq.s32.totalorder %s35, 0
      %p161 = por %p159, %p160
      %s163 = sadd.s32 %s162, 1
      %p166 = scmp.eq.s32.totalorder %s29, 1
      %p167 = scmp.ne.s32.totalorder %s162, %s164
      %p168 = scmp.eq.s32.totalorder %s29, 0
      %p169 = por %p167, %p168
      %p170 = scmp.ne.s32.totalorder %s162, %s164
      %p171 = scmp.eq.s32.totalorder %s34, 1
      %p172 = por %p170, %p171
      %p173 = scmp.ne.s32.totalorder %s164, %s165
      %p174 = scmp.eq.s32.totalorder %s34, 0
      %p175 = por %p173, %p174
      %p176 = scmp.ne.s32.totalorder %s164, %s165
      %p177 = scmp.eq.s32.totalorder %s35, 1
      %p178 = por %p176, %p177
      %p180 = scmp.ne.s32.totalorder %s165, %s179
      %p181 = scmp.eq.s32.totalorder %s35, 0
      %p182 = por %p180, %p181
      %s184 = sadd.s32 %s183, 1
      %p187 = scmp.eq.s32.totalorder %s29, 1
      %p188 = scmp.ne.s32.totalorder %s183, %s185
      %p189 = scmp.eq.s32.totalorder %s29, 0
      %p190 = por %p188, %p189
      %p191 = scmp.ne.s32.totalorder %s183, %s185
      %p192 = scmp.eq.s32.totalorder %s34, 1
      %p193 = por %p191, %p192
      %p194 = scmp.ne.s32.totalorder %s185, %s186
      %p195 = scmp.eq.s32.totalorder %s34, 0
      %p196 = por %p194, %p195
      %p197 = scmp.ne.s32.totalorder %s185, %s186
      %p198 = scmp.eq.s32.totalorder %s35, 1
      %p199 = por %p197, %p198
      %p201 = scmp.ne.s32.totalorder %s186, %s200
      %p202 = scmp.eq.s32.totalorder %s35, 0
      %p203 = por %p201, %p202
      %s205 = sadd.s32 %s204, 1
      %p208 = scmp.eq.s32.totalorder %s29, 1
      %p209 = scmp.ne.s32.totalorder %s204, %s206
      %p210 = scmp.eq.s32.totalorder %s29, 0
      %p211 = por %p209, %p210
      %p212 = scmp.ne.s32.totalorder %s204, %s206
      %p213 = scmp.eq.s32.totalorder %s34, 1
      %p214 = por %p212, %p213
      %p215 = scmp.ne.s32.totalorder %s206, %s207
      %p216 = scmp.eq.s32.totalorder %s34, 0
      %p217 = por %p215, %p216
      %p218 = scmp.ne.s32.totalorder %s206, %s207
      %p219 = scmp.eq.s32.totalorder %s35, 1
      %p220 = por %p218, %p219
      %p222 = scmp.ne.s32.totalorder %s207, %s221
      %p223 = scmp.eq.s32.totalorder %s35, 0
      %p224 = por %p222, %p223
      %s226 = sadd.s32 %s225, 1
      %p229 = scmp.eq.s32.totalorder %s29, 1
      %p230 = scmp.ne.s32.totalorder %s225, %s227
      %p231 = scmp.eq.s32.totalorder %s29, 0
      %p232 = por %p230, %p231
      %p233 = scmp.ne.s32.totalorder %s225, %s227
      %p234 = scmp.eq.s32.totalorder %s34, 1
      %p235 = por %p233, %p234
      %p236 = scmp.ne.s32.totalorder %s227, %s228
      %p237 = scmp.eq.s32.totalorder %s34, 0
      %p238 = por %p236, %p237
      %p239 = scmp.ne.s32.totalorder %s227, %s228
      %p240 = scmp.eq.s32.totalorder %s35, 1
      %p241 = por %p239, %p240
      %p243 = scmp.ne.s32.totalorder %s228, %s242
      %p244 = scmp.eq.s32.totalorder %s35, 0
      %p245 = por %p243, %p244
      %s247 = sadd.s32 %s246, 1
      %p250 = scmp.eq.s32.totalorder %s29, 1
      %p251 = scmp.ne.s32.totalorder %s246, %s248
      %p252 = scmp.eq.s32.totalorder %s29, 0
      %p253 = por %p251, %p252
      %p254 = scmp.ne.s32.totalorder %s246, %s248
      %p255 = scmp.eq.s32.totalorder %s34, 1
      %p256 = por %p254, %p255
      %p257 = scmp.ne.s32.totalorder %s248, %s249
      %p258 = scmp.eq.s32.totalorder %s34, 0
      %p259 = por %p257, %p258
      %p260 = scmp.ne.s32.totalorder %s248, %s249
      %p261 = scmp.eq.s32.totalorder %s35, 1
      %p262 = por %p260, %p261
      %p264 = scmp.ne.s32.totalorder %s249, %s263
      %p265 = scmp.eq.s32.totalorder %s35, 0
      %p266 = por %p264, %p265
      %s268 = sadd.s32 %s267, 1
      %p271 = scmp.eq.s32.totalorder %s29, 1
      %p272 = scmp.ne.s32.totalorder %s267, %s269
      %p273 = scmp.eq.s32.totalorder %s29, 0
      %p274 = por %p272, %p273
      %p275 = scmp.ne.s32.totalorder %s267, %s269
      %p276 = scmp.eq.s32.totalorder %s34, 1
      %p277 = por %p275, %p276
      %p278 = scmp.ne.s32.totalorder %s269, %s270
      %p279 = scmp.eq.s32.totalorder %s34, 0
      %p280 = por %p278, %p279
      %p281 = scmp.ne.s32.totalorder %s269, %s270
      %p282 = scmp.eq.s32.totalorder %s35, 1
      %p283 = por %p281, %p282
      %p285 = scmp.ne.s32.totalorder %s270, %s284
      %p286 = scmp.eq.s32.totalorder %s35, 0
      %p287 = por %p285, %p286
      %s289 = sadd.s32 %s288, 1
      %p292 = scmp.eq.s32.totalorder %s29, 1
      %p293 = scmp.ne.s32.totalorder %s288, %s290
      %p294 = scmp.eq.s32.totalorder %s29, 0
      %p295 = por %p293, %p294
      %p296 = scmp.ne.s32.totalorder %s288, %s290
      %p297 = scmp.eq.s32.totalorder %s34, 1
      %p298 = por %p296, %p297
      %p299 = scmp.ne.s32.totalorder %s290, %s291
      %p300 = scmp.eq.s32.totalorder %s34, 0
      %p301 = por %p299, %p300
      %p302 = scmp.ne.s32.totalorder %s290, %s291
      %p303 = scmp.eq.s32.totalorder %s35, 1
      %p304 = por %p302, %p303
      %p306 = scmp.ne.s32.totalorder %s291, %s305
      %p307 = scmp.eq.s32.totalorder %s35, 0
      %p308 = por %p306, %p307
      %s309 = ssub.s32 %s29, %s36
      %p310 = scmp.eq.s32.totalorder %s309, 0
      %s312 = sadd.s32 %s311, 1
      %s313 = scalar_select %p310, %s311, %s312
      %p316 = pneg %p310
      %p317 = scmp.eq.s32.totalorder %s29, 1
      %p318 = por %p316, %p317
      %p319 = scmp.ne.s32.totalorder %s311, %s314
      %p320 = scmp.eq.s32.totalorder %s29, 0
      %p321 = por %p319, %p320
      %p322 = scmp.ne.s32.totalorder %s311, %s314
      %p323 = scmp.eq.s32.totalorder %s34, 1
      %p324 = por %p322, %p323
      %p325 = scmp.ne.s32.totalorder %s314, %s315
      %p326 = scmp.eq.s32.totalorder %s34, 0
      %p327 = por %p325, %p326
      %p328 = scmp.ne.s32.totalorder %s314, %s315
      %p329 = scmp.eq.s32.totalorder %s35, 1
      %p330 = por %p328, %p329
      %p332 = scmp.ne.s32.totalorder %s315, %s331
      %p333 = scmp.eq.s32.totalorder %s35, 0
      %p334 = por %p332, %p333
      %p335 = scmp.le.s32.totalorder 1, %s29
      %p336 = scmp.lt.s32.totalorder %s29, 3
      %p337 = pnand %p335, %p336
      %p338 = pneg %p337
      // Predicated region
      $region9: #{tpu_custom_call.1} parent=5 // pred_check
        _
      $region10: #{tpu_custom_call.1} parent=5 // pred_check_branch
        %340 = sbr.rel (%p337) target = $region12
      $region11: #{tpu_custom_call.1} parent=5 // pred_region
        %s341 = ssub.s32 %s29, 1
        // Predicated region
        $region13: #{tpu_custom_call.1} parent=11 // pred_check
          %p342 = pneg %p154
        $region14: #{tpu_custom_call.1} parent=11 // pred_check_branch
          %344 = sbr.rel (%p342) target = $region16
        $region15: #{tpu_custom_call.1} parent=11 // pred_region
          %s346 = ssub.s32 8192, 8192
          %347 = vsyncadd [#allocation9], %s346
          %s348 = sshll.u32 [#allocation8], 4
          %s349 = int_to_ptr.vmem [resolvable:$true] %s348
          %354 = dma.hbm_to_vmem [thread:$0]  %s4, 8192, %s349, [#allocation9], 256, 256, 16
        $region16: #{tpu_custom_call.1} parent=11 // pred_fallthru
          _
        // Predicated region
        $region17: #{tpu_custom_call.1} parent=11 // pred_check
          %p355 = pneg %p175
        $region18: #{tpu_custom_call.1} parent=11 // pred_check_branch
          %357 = sbr.rel (%p355) target = $region20
        $region19: #{tpu_custom_call.1} parent=11 // pred_region
          _
        $region20: #{tpu_custom_call.1} parent=11 // pred_fallthru
          _
        // Predicated region
        $region21: #{tpu_custom_call.1} parent=11 // pred_check
          %p358 = pneg %p196
        $region22: #{tpu_custom_call.1} parent=11 // pred_check_branch
          %360 = sbr.rel (%p358) target = $region24
        $region23: #{tpu_custom_call.1} parent=11 // pred_region
          %s362 = ssub.s32 8192, 8192
          %363 = vsyncadd [#allocation9], %s362
          %s364 = sshll.u32 [#allocation10], 4
          %s365 = int_to_ptr.vmem [resolvable:$true] %s364
          %370 = dma.hbm_to_vmem [thread:$0]  %s6, 8192, %s365, [#allocation9], 256, 256, 16
        $region24: #{tpu_custom_call.1} parent=11 // pred_fallthru
          _
        // Predicated region
        $region25: #{tpu_custom_call.1} parent=11 // pred_check
          %p371 = pneg %p217
        $region26: #{tpu_custom_call.1} parent=11 // pred_check_branch
          %373 = sbr.rel (%p371) target = $region28
        $region27: #{tpu_custom_call.1} parent=11 // pred_region
          _
        $region28: #{tpu_custom_call.1} parent=11 // pred_fallthru
          _
        // Predicated region
        $region29: #{tpu_custom_call.1} parent=11 // pred_check
          %p374 = pneg %p238
        $region30: #{tpu_custom_call.1} parent=11 // pred_check_branch
          %376 = sbr.rel (%p374) target = $region32
        $region31: #{tpu_custom_call.1} parent=11 // pred_region
          %s378 = ssub.s32 8192, 8192
          %379 = vsyncadd [#allocation12], %s378
          %s380 = sshll.u32 [#allocation11], 4
          %s381 = int_to_ptr.vmem [resolvable:$true] %s380
          %386 = dma.hbm_to_vmem [thread:$0]  %s8, 8192, %s381, [#allocation12], 256, 256, 16
        $region32: #{tpu_custom_call.1} parent=11 // pred_fallthru
          _
        // Predicated region
        $region33: #{tpu_custom_call.1} parent=11 // pred_check
          %p387 = pneg %p259
        $region34: #{tpu_custom_call.1} parent=11 // pred_check_branch
          %389 = sbr.rel (%p387) target = $region36
        $region35: #{tpu_custom_call.1} parent=11 // pred_region
          _
        $region36: #{tpu_custom_call.1} parent=11 // pred_fallthru
          _
        // Predicated region
        $region37: #{tpu_custom_call.1} parent=11 // pred_check
          %p390 = pneg %p280
        $region38: #{tpu_custom_call.1} parent=11 // pred_check_branch
          %392 = sbr.rel (%p390) target = $region40
        $region39: #{tpu_custom_call.1} parent=11 // pred_region
          %s394 = ssub.s32 8192, 8192
          %395 = vsyncadd [#allocation12], %s394
          %s396 = sshll.u32 [#allocation13], 4
          %s397 = int_to_ptr.vmem [resolvable:$true] %s396
          %402 = dma.hbm_to_vmem [thread:$0]  %s10, 8192, %s397, [#allocation12], 256, 256, 16
        $region40: #{tpu_custom_call.1} parent=11 // pred_fallthru
          _
        // Predicated region
        $region41: #{tpu_custom_call.1} parent=11 // pred_check
          %p403 = pneg %p301
        $region42: #{tpu_custom_call.1} parent=11 // pred_check_branch
          %405 = sbr.rel (%p403) target = $region44
        $region43: #{tpu_custom_call.1} parent=11 // pred_region
          _
        $region44: #{tpu_custom_call.1} parent=11 // pred_fallthru
          _
      $region12: #{tpu_custom_call.1} parent=5 // pred_fallthru
        _
      %p406 = scmp.lt.s32.totalorder %s29, 2
      // Predicated region
      $region45: #{tpu_custom_call.1} parent=5 // pred_check
        %p407 = pneg %p406
      $region46: #{tpu_custom_call.1} parent=5 // pred_check_branch
        %409 = sbr.rel (%p407) target = $region48
      $region47: #{tpu_custom_call.1} parent=5 // pred_region
        // Predicated region
        $region49: #{tpu_custom_call.1} parent=47 // pred_check
          %p410 = pneg %p49
        $region50: #{tpu_custom_call.1} parent=47 // pred_check_branch
          %412 = sbr.rel (%p410) target = $region52
        $region51: #{tpu_custom_call.1} parent=47 // pred_region
          %s413 = sand.u32 %s39, 1
          %s414 = scalar_lea.sflag [#allocation3], %s413
          %s415 = sand.u32 %s39, 1
          %s416 = smul.addr %s415, 16
          %s417 = scalar_lea.vmem [#allocation2], %s416
          %s419 = ssub.s32 256, 256
          %420 = vsyncadd %s414, %s419
          %s421 = smul.addr %s29, 2
          %s422 = smul.addr %s421, 128
          %s423 = scalar_lea.hbm %s0, %s422
          %s425 = sshll.u32 %s417, 4
          %s426 = int_to_ptr.vmem [resolvable:$true] %s425
          %428 = dma.hbm_to_vmem [thread:$0]  %s423, 256, %s426, %s414
        $region52: #{tpu_custom_call.1} parent=47 // pred_fallthru
          _
        // Predicated region
        $region53: #{tpu_custom_call.1} parent=47 // pred_check
          %p429 = pneg %p75
        $region54: #{tpu_custom_call.1} parent=47 // pred_check_branch
          %431 = sbr.rel (%p429) target = $region56
        $region55: #{tpu_custom_call.1} parent=47 // pred_region
          %s432 = sand.u32 %s29, 1
          %s433 = scalar_lea.sflag [#allocation6], %s432
          %s434 = sand.u32 %s65, 1
          %s435 = smul.addr %s434, 16
          %s436 = scalar_lea.vmem [#allocation5], %s435
          %s438 = ssub.s32 256, 256
          %439 = vsyncadd %s433, %s438
          %s440 = smul.addr %s29, 2
          %s441 = smul.addr %s440, 128
          %s442 = scalar_lea.hbm %s1, %s441
          %s444 = sshll.u32 %s436, 4
          %s445 = int_to_ptr.vmem [resolvable:$true] %s444
          %447 = dma.hbm_to_vmem [thread:$0]  %s442, 256, %s445, %s433
        $region56: #{tpu_custom_call.1} parent=47 // pred_fallthru
          _
        // Predicated region
        $region57: #{tpu_custom_call.1} parent=47 // pred_check
          %p448 = pneg %p101
        $region58: #{tpu_custom_call.1} parent=47 // pred_check_branch
          %450 = sbr.rel (%p448) target = $region60
        $region59: #{tpu_custom_call.1} parent=47 // pred_region
          %s451 = sand.u32 %s29, 1
          %s452 = scalar_lea.sflag [#allocation6], %s451
          %s453 = sand.u32 %s91, 1
          %s454 = smul.addr %s453, 16
          %s455 = scalar_lea.vmem [#allocation7], %s454
          %s457 = ssub.s32 256, 256
          %458 = vsyncadd %s452, %s457
          %s459 = smul.addr %s29, 2
          %s460 = smul.addr %s459, 128
          %s461 = scalar_lea.hbm %s2, %s460
          %s463 = sshll.u32 %s455, 4
          %s464 = int_to_ptr.vmem [resolvable:$true] %s463
          %466 = dma.hbm_to_vmem [thread:$0]  %s461, 256, %s464, %s452
        $region60: #{tpu_custom_call.1} parent=47 // pred_fallthru
          _
        // Predicated region
        $region61: #{tpu_custom_call.1} parent=47 // pred_check
          %p467 = pneg %p127
        $region62: #{tpu_custom_call.1} parent=47 // pred_check_branch
          %469 = sbr.rel (%p467) target = $region64
        $region63: #{tpu_custom_call.1} parent=47 // pred_region
          %p470 = scmp.lt.s32.totalorder %s29, 1
          %s471 = scalar_select %p470, %s29, 1
          %s472 = scalar_lea.vmem %s3, %s471
        $region64: #{tpu_custom_call.1} parent=47 // pred_fallthru
          _
      $region48: #{tpu_custom_call.1} parent=5 // pred_fallthru
        _
      %p473 = scmp.le.s32.totalorder 1, %s29
      %p474 = scmp.lt.s32.totalorder %s29, 3
      %p475 = pnand %p473, %p474
      %p476 = pneg %p475
      // Predicated region
      $region65: #{tpu_custom_call.1} parent=5 // pred_check
        _
      $region66: #{tpu_custom_call.1} parent=5 // pred_check_branch
        %478 = sbr.rel (%p475) target = $region68
      $region67: #{tpu_custom_call.1} parent=5 // pred_region
        %s479 = ssub.s32 %s29, 1
        %s480 = sand.u32 %s42, 1
        %s481 = scalar_lea.sflag [#allocation3], %s480
        %s482 = sand.u32 %s42, 1
        %s483 = smul.addr %s482, 16
        %s484 = scalar_lea.vmem [#allocation2], %s483
        // Predicated region
        $region69: #{tpu_custom_call.1} parent=67 // pred_check
          %p485 = pneg %p55
        $region70: #{tpu_custom_call.1} parent=67 // pred_check_branch
          %487 = sbr.rel (%p485) target = $region72
        $region71: #{tpu_custom_call.1} parent=67 // pred_region
          %488 = dma.done %s481, 256
        $region72: #{tpu_custom_call.1} parent=67 // pred_fallthru
          _
        %s489 = sand.u32 %s34, 1
        %s490 = scalar_lea.sflag [#allocation6], %s489
        %s491 = sand.u32 %s68, 1
        %s492 = smul.addr %s491, 16
        %s493 = scalar_lea.vmem [#allocation5], %s492
        // Predicated region
        $region73: #{tpu_custom_call.1} parent=67 // pred_check
          %p494 = pneg %p81
        $region74: #{tpu_custom_call.1} parent=67 // pred_check_branch
          %496 = sbr.rel (%p494) target = $region76
        $region75: #{tpu_custom_call.1} parent=67 // pred_region
          %497 = dma.done %s490, 256
        $region76: #{tpu_custom_call.1} parent=67 // pred_fallthru
          _
        %s498 = sand.u32 %s34, 1
        %s499 = scalar_lea.sflag [#allocation6], %s498
        %s500 = sand.u32 %s94, 1
        %s501 = smul.addr %s500, 16
        %s502 = scalar_lea.vmem [#allocation7], %s501
        // Predicated region
        $region77: #{tpu_custom_call.1} parent=67 // pred_check
          %p503 = pneg %p107
        $region78: #{tpu_custom_call.1} parent=67 // pred_check_branch
          %505 = sbr.rel (%p503) target = $region80
        $region79: #{tpu_custom_call.1} parent=67 // pred_region
          %506 = dma.done %s499, 256
        $region80: #{tpu_custom_call.1} parent=67 // pred_fallthru
          _
        // Predicated region
        $region81: #{tpu_custom_call.1} parent=67 // pred_check
          %p507 = pneg %p154
        $region82: #{tpu_custom_call.1} parent=67 // pred_check_branch
          %509 = sbr.rel (%p507) target = $region84
        $region83: #{tpu_custom_call.1} parent=67 // pred_region
          %510 = dma.done [#allocation9], 8192
        $region84: #{tpu_custom_call.1} parent=67 // pred_fallthru
          _
        // Predicated region
        $region85: #{tpu_custom_call.1} parent=67 // pred_check
          %p511 = pneg %p196
        $region86: #{tpu_custom_call.1} parent=67 // pred_check_branch
          %513 = sbr.rel (%p511) target = $region88
        $region87: #{tpu_custom_call.1} parent=67 // pred_region
          %514 = dma.done [#allocation9], 8192
        $region88: #{tpu_custom_call.1} parent=67 // pred_fallthru
          _
        // Predicated region
        $region89: #{tpu_custom_call.1} parent=67 // pred_check
          %p515 = pneg %p238
        $region90: #{tpu_custom_call.1} parent=67 // pred_check_branch
          %517 = sbr.rel (%p515) target = $region92
        $region91: #{tpu_custom_call.1} parent=67 // pred_region
          %518 = dma.done [#allocation12], 8192
        $region92: #{tpu_custom_call.1} parent=67 // pred_fallthru
          _
        // Predicated region
        $region93: #{tpu_custom_call.1} parent=67 // pred_check
          %p519 = pneg %p280
        $region94: #{tpu_custom_call.1} parent=67 // pred_check_branch
          %521 = sbr.rel (%p519) target = $region96
        $region95: #{tpu_custom_call.1} parent=67 // pred_region
          %522 = dma.done [#allocation12], 8192
        $region96: #{tpu_custom_call.1} parent=67 // pred_fallthru
          _
        %s523 = sand.u32 %s42, 1
        %s524 = scalar_lea.sflag [#allocation3], %s523
        %s525 = sand.u32 %s42, 1
        %s526 = smul.addr %s525, 16
        %s527 = scalar_lea.vmem [#allocation2], %s526
        %p528 = pneg %p55
        %p529 = pneg %p52
        %s530 = sand.u32 %s34, 1
        %s531 = scalar_lea.sflag [#allocation6], %s530
        %s532 = sand.u32 %s68, 1
        %s533 = smul.addr %s532, 16
        %s534 = scalar_lea.vmem [#allocation5], %s533
        %p535 = pneg %p81
        %p536 = pneg %p78
        %s537 = sand.u32 %s34, 1
        %s538 = scalar_lea.sflag [#allocation6], %s537
        %s539 = sand.u32 %s94, 1
        %s540 = smul.addr %s539, 16
        %s541 = scalar_lea.vmem [#allocation7], %s540
        %p542 = pneg %p107
        %p543 = pneg %p104
        %p544 = scmp.lt.s32.totalorder %s34, 1
        %s545 = scalar_select %p544, %s34, 1
        %s546 = scalar_lea.vmem %s3, %s545
        %p547 = pneg %p133
        %p548 = pneg %p130
        %p549 = pneg %p154
        %p550 = pneg %p151
        %p551 = pneg %p175
        %p552 = pneg %p172
        %p553 = pneg %p196
        %p554 = pneg %p193
        %p555 = pneg %p217
        %p556 = pneg %p214
        %p557 = pneg %p238
        %p558 = pneg %p235
        %p559 = pneg %p259
        %p560 = pneg %p256
        %p561 = pneg %p280
        %p562 = pneg %p277
        %p563 = pneg %p301
        %p564 = pneg %p298
        %p565 = pneg %p327
        %p566 = pneg %p324
        %s567 = sand.u32 %s314, 1
        %s568 = scalar_lea.sflag [#allocation4], %s567
        %s569 = sand.u32 %s314, 1
        %s570 = smul.addr %s569, 16
        %s571 = scalar_lea.vmem [#allocation14], %s570
        %p572 = scmp.lt.s32.totalorder %s34, 1
        %s573 = scalar_select %p572, %s34, 1
        %s574 = scalar_lea.vmem %s3, %s573
        %v575 = vld [vmem:[%s484] sm:$0xff]
        %v576 = vld [vmem:[%s484 + $0x8] sm:$0xff]
        %v577 = vld [vmem:[%s493] sm:$0xff]
        %v578 = vld [vmem:[%s493 + $0x8] sm:$0xff]
        %v579 = vld [vmem:[%s502] sm:$0xff]
        %v580 = vld [vmem:[%s502 + $0x8] sm:$0xff]
        %v581 = vld [vmem:[#allocation8] sm:$0xff]
        %v582 = vld [vmem:[#allocation8 + $0x8] sm:$0xff]
        %v583 = vld [vmem:[#allocation8 + $0x10] sm:$0xff]
        %v584 = vld [vmem:[#allocation8 + $0x18] sm:$0xff]
        %v585 = vld [vmem:[#allocation8 + $0x20] sm:$0xff]
        %v586 = vld [vmem:[#allocation8 + $0x28] sm:$0xff]
        %v587 = vld [vmem:[#allocation8 + $0x30] sm:$0xff]
        %v588 = vld [vmem:[#allocation8 + $0x38] sm:$0xff]
        %v589 = vld [vmem:[#allocation8 + $0x40] sm:$0xff]
        %v590 = vld [vmem:[#allocation8 + $0x48] sm:$0xff]
        %v591 = vld [vmem:[#allocation8 + $0x50] sm:$0xff]
        %v592 = vld [vmem:[#allocation8 + $0x58] sm:$0xff]
        %v593 = vld [vmem:[#allocation8 + $0x60] sm:$0xff]
        %v594 = vld [vmem:[#allocation8 + $0x68] sm:$0xff]
        %v595 = vld [vmem:[#allocation8 + $0x70] sm:$0xff]
        %v596 = vld [vmem:[#allocation8 + $0x78] sm:$0xff]
        %v597 = vld [vmem:[#allocation8 + $0x80] sm:$0xff]
        %v598 = vld [vmem:[#allocation8 + $0x88] sm:$0xff]
        %v599 = vld [vmem:[#allocation8 + $0x90] sm:$0xff]
        %v600 = vld [vmem:[#allocation8 + $0x98] sm:$0xff]
        %v601 = vld [vmem:[#allocation8 + $0xa0] sm:$0xff]
        %v602 = vld [vmem:[#allocation8 + $0xa8] sm:$0xff]
        %v603 = vld [vmem:[#allocation8 + $0xb0] sm:$0xff]
        %v604 = vld [vmem:[#allocation8 + $0xb8] sm:$0xff]
        %v605 = vld [vmem:[#allocation8 + $0xc0] sm:$0xff]
        %v606 = vld [vmem:[#allocation8 + $0xc8] sm:$0xff]
        %v607 = vld [vmem:[#allocation8 + $0xd0] sm:$0xff]
        %v608 = vld [vmem:[#allocation8 + $0xd8] sm:$0xff]
        %v609 = vld [vmem:[#allocation8 + $0xe0] sm:$0xff]
        %v610 = vld [vmem:[#allocation8 + $0xe8] sm:$0xff]
        %v611 = vld [vmem:[#allocation8 + $0xf0] sm:$0xff]
        %v612 = vld [vmem:[#allocation8 + $0xf8] sm:$0xff]
        %v613 = vld [vmem:[#allocation8 + $0x100] sm:$0xff]
        %v614 = vld [vmem:[#allocation8 + $0x108] sm:$0xff]
        %v615 = vld [vmem:[#allocation8 + $0x110] sm:$0xff]
        %v616 = vld [vmem:[#allocation8 + $0x118] sm:$0xff]
        %v617 = vld [vmem:[#allocation8 + $0x120] sm:$0xff]
        %v618 = vld [vmem:[#allocation8 + $0x128] sm:$0xff]
        %v619 = vld [vmem:[#allocation8 + $0x130] sm:$0xff]
        %v620 = vld [vmem:[#allocation8 + $0x138] sm:$0xff]
        %v621 = vld [vmem:[#allocation8 + $0x140] sm:$0xff]
        %v622 = vld [vmem:[#allocation8 + $0x148] sm:$0xff]
        %v623 = vld [vmem:[#allocation8 + $0x150] sm:$0xff]
        %v624 = vld [vmem:[#allocation8 + $0x158] sm:$0xff]
        %v625 = vld [vmem:[#allocation8 + $0x160] sm:$0xff]
        %v626 = vld [vmem:[#allocation8 + $0x168] sm:$0xff]
        %v627 = vld [vmem:[#allocation8 + $0x170] sm:$0xff]
        %v628 = vld [vmem:[#allocation8 + $0x178] sm:$0xff]
        %v629 = vld [vmem:[#allocation8 + $0x180] sm:$0xff]
        %v630 = vld [vmem:[#allocation8 + $0x188] sm:$0xff]
        %v631 = vld [vmem:[#allocation8 + $0x190] sm:$0xff]
        %v632 = vld [vmem:[#allocation8 + $0x198] sm:$0xff]
        %v633 = vld [vmem:[#allocation8 + $0x1a0] sm:$0xff]
        %v634 = vld [vmem:[#allocation8 + $0x1a8] sm:$0xff]
        %v635 = vld [vmem:[#allocation8 + $0x1b0] sm:$0xff]
        %v636 = vld [vmem:[#allocation8 + $0x1b8] sm:$0xff]
        %v637 = vld [vmem:[#allocation8 + $0x1c0] sm:$0xff]
        %v638 = vld [vmem:[#allocation8 + $0x1c8] sm:$0xff]
        %v639 = vld [vmem:[#allocation8 + $0x1d0] sm:$0xff]
        %v640 = vld [vmem:[#allocation8 + $0x1d8] sm:$0xff]
        %v641 = vld [vmem:[#allocation8 + $0x1e0] sm:$0xff]
        %v642 = vld [vmem:[#allocation8 + $0x1e8] sm:$0xff]
        %v643 = vld [vmem:[#allocation8 + $0x1f0] sm:$0xff]
        %v644 = vld [vmem:[#allocation8 + $0x1f8] sm:$0xff]
        %v645 = vld [vmem:[%s5] sm:$0x3]
        %v647 = vlaneseq
        %v648 = vshrl.u32 %v647, 7
        %v649 = vsub.s32 0, %v648
        %v650 = vrot.slane %v645, %v649
        %v651 = vlaneseq
        %v652 = vshrl.u32 %v651, 7
        %v653 = vsub.s32 1, %v652
        %v654 = vrot.slane %v645, %v653
        %657 = vmatprep.subr.mxu0 %v582
        %658 = vmatpush1.msra.mxu0 %v581
        %659 = vmatprep.subr.mxu0 %v584
        %660 = vmatpush1.msra.mxu0 %v583
        %661 = vmatprep.subr.mxu0 %v586
        %662 = vmatpush1.msra.mxu0 %v585
        %663 = vmatprep.subr.mxu0 %v588
        %664 = vmatpush1.msra.mxu0 %v587
        %665 = vmatprep.subr.mxu0 %v590
        %666 = vmatpush1.msra.mxu0 %v589
        %667 = vmatprep.subr.mxu0 %v592
        %668 = vmatpush1.msra.mxu0 %v591
        %669 = vmatprep.subr.mxu0 %v594
        %670 = vmatpush1.msra.mxu0 %v593
        %671 = vmatprep.subr.mxu0 %v596
        %672 = vmatpush1.msra.mxu0 %v595
        %673 = vmatprep.subr.mxu0 %v598
        %674 = vmatpush1.msra.mxu0 %v597
        %675 = vmatprep.subr.mxu0 %v600
        %676 = vmatpush1.msra.mxu0 %v599
        %677 = vmatprep.subr.mxu0 %v602
        %678 = vmatpush1.msra.mxu0 %v601
        %679 = vmatprep.subr.mxu0 %v604
        %680 = vmatpush1.msra.mxu0 %v603
        %681 = vmatprep.subr.mxu0 %v606
        %682 = vmatpush1.msra.mxu0 %v605
        %683 = vmatprep.subr.mxu0 %v608
        %684 = vmatpush1.msra.mxu0 %v607
        %685 = vmatprep.subr.mxu0 %v610
        %686 = vmatpush1.msra.mxu0 %v609
        %687 = vmatprep.subr.mxu0 %v612
        %688 = vmatpush1.msra.mxu0 %v611
        %689 = vmatprep.subr.mxu0 %v614
        %690 = vmatpush1.msra.mxu0 %v613
        %691 = vmatprep.subr.mxu0 %v616
        %692 = vmatpush1.msra.mxu0 %v615
        %693 = vmatprep.subr.mxu0 %v618
        %694 = vmatpush1.msra.mxu0 %v617
        %695 = vmatprep.subr.mxu0 %v620
        %696 = vmatpush1.msra.mxu0 %v619
        %697 = vmatprep.subr.mxu0 %v622
        %698 = vmatpush1.msra.mxu0 %v621
        %699 = vmatprep.subr.mxu0 %v624
        %700 = vmatpush1.msra.mxu0 %v623
        %701 = vmatprep.subr.mxu0 %v626
        %702 = vmatpush1.msra.mxu0 %v625
        %703 = vmatprep.subr.mxu0 %v628
        %704 = vmatpush1.msra.mxu0 %v627
        %705 = vmatprep.subr.mxu0 %v630
        %706 = vmatpush1.msra.mxu0 %v629
        %707 = vmatprep.subr.mxu0 %v632
        %708 = vmatpush1.msra.mxu0 %v631
        %709 = vmatprep.subr.mxu0 %v634
        %710 = vmatpush1.msra.mxu0 %v633
        %711 = vmatprep.subr.mxu0 %v636
        %712 = vmatpush1.msra.mxu0 %v635
        %713 = vmatprep.subr.mxu0 %v638
        %714 = vmatpush1.msra.mxu0 %v637
        %715 = vmatprep.subr.mxu0 %v640
        %716 = vmatpush1.msra.mxu0 %v639
        %717 = vmatprep.subr.mxu0 %v642
        %718 = vmatpush1.msra.mxu0 %v641
        %719 = vmatprep.subr.mxu0 %v644
        %720 = vmatpush1.msra.mxu0 %v643
        %721 = vmatprep.mubr.f32.mxu0 %v576
        %722 = vmatmul.mubr.f32.gmra.mrb[0].mxu0 %v575
        %v723 = vpop.f32.mrb[0].mxu0
        %v724 = vadd.f32 %v650, %v723
        %v725 = vpop.f32.mrb[0].mxu0
        %v726 = vadd.f32 %v654, %v725
        %727 = vdwg.mxu0
        %v728 = vld [vmem:[#allocation10] sm:$0xff]
        %v729 = vld [vmem:[#allocation10 + $0x8] sm:$0xff]
        %v730 = vld [vmem:[#allocation10 + $0x10] sm:$0xff]
        %v731 = vld [vmem:[#allocation10 + $0x18] sm:$0xff]
        %v732 = vld [vmem:[#allocation10 + $0x20] sm:$0xff]
        %v733 = vld [vmem:[#allocation10 + $0x28] sm:$0xff]
        %v734 = vld [vmem:[#allocation10 + $0x30] sm:$0xff]
        %v735 = vld [vmem:[#allocation10 + $0x38] sm:$0xff]
        %v736 = vld [vmem:[#allocation10 + $0x40] sm:$0xff]
        %v737 = vld [vmem:[#allocation10 + $0x48] sm:$0xff]
        %v738 = vld [vmem:[#allocation10 + $0x50] sm:$0xff]
        %v739 = vld [vmem:[#allocation10 + $0x58] sm:$0xff]
        %v740 = vld [vmem:[#allocation10 + $0x60] sm:$0xff]
        %v741 = vld [vmem:[#allocation10 + $0x68] sm:$0xff]
        %v742 = vld [vmem:[#allocation10 + $0x70] sm:$0xff]
        %v743 = vld [vmem:[#allocation10 + $0x78] sm:$0xff]
        %v744 = vld [vmem:[#allocation10 + $0x80] sm:$0xff]
        %v745 = vld [vmem:[#allocation10 + $0x88] sm:$0xff]
        %v746 = vld [vmem:[#allocation10 + $0x90] sm:$0xff]
        %v747 = vld [vmem:[#allocation10 + $0x98] sm:$0xff]
        %v748 = vld [vmem:[#allocation10 + $0xa0] sm:$0xff]
        %v749 = vld [vmem:[#allocation10 + $0xa8] sm:$0xff]
        %v750 = vld [vmem:[#allocation10 + $0xb0] sm:$0xff]
        %v751 = vld [vmem:[#allocation10 + $0xb8] sm:$0xff]
        %v752 = vld [vmem:[#allocation10 + $0xc0] sm:$0xff]
        %v753 = vld [vmem:[#allocation10 + $0xc8] sm:$0xff]
        %v754 = vld [vmem:[#allocation10 + $0xd0] sm:$0xff]
        %v755 = vld [vmem:[#allocation10 + $0xd8] sm:$0xff]
        %v756 = vld [vmem:[#allocation10 + $0xe0] sm:$0xff]
        %v757 = vld [vmem:[#allocation10 + $0xe8] sm:$0xff]
        %v758 = vld [vmem:[#allocation10 + $0xf0] sm:$0xff]
        %v759 = vld [vmem:[#allocation10 + $0xf8] sm:$0xff]
        %v760 = vld [vmem:[#allocation10 + $0x100] sm:$0xff]
        %v761 = vld [vmem:[#allocation10 + $0x108] sm:$0xff]
        %v762 = vld [vmem:[#allocation10 + $0x110] sm:$0xff]
        %v763 = vld [vmem:[#allocation10 + $0x118] sm:$0xff]
        %v764 = vld [vmem:[#allocation10 + $0x120] sm:$0xff]
        %v765 = vld [vmem:[#allocation10 + $0x128] sm:$0xff]
        %v766 = vld [vmem:[#allocation10 + $0x130] sm:$0xff]
        %v767 = vld [vmem:[#allocation10 + $0x138] sm:$0xff]
        %v768 = vld [vmem:[#allocation10 + $0x140] sm:$0xff]
        %v769 = vld [vmem:[#allocation10 + $0x148] sm:$0xff]
        %v770 = vld [vmem:[#allocation10 + $0x150] sm:$0xff]
        %v771 = vld [vmem:[#allocation10 + $0x158] sm:$0xff]
        %v772 = vld [vmem:[#allocation10 + $0x160] sm:$0xff]
        %v773 = vld [vmem:[#allocation10 + $0x168] sm:$0xff]
        %v774 = vld [vmem:[#allocation10 + $0x170] sm:$0xff]
        %v775 = vld [vmem:[#allocation10 + $0x178] sm:$0xff]
        %v776 = vld [vmem:[#allocation10 + $0x180] sm:$0xff]
        %v777 = vld [vmem:[#allocation10 + $0x188] sm:$0xff]
        %v778 = vld [vmem:[#allocation10 + $0x190] sm:$0xff]
        %v779 = vld [vmem:[#allocation10 + $0x198] sm:$0xff]
        %v780 = vld [vmem:[#allocation10 + $0x1a0] sm:$0xff]
        %v781 = vld [vmem:[#allocation10 + $0x1a8] sm:$0xff]
        %v782 = vld [vmem:[#allocation10 + $0x1b0] sm:$0xff]
        %v783 = vld [vmem:[#allocation10 + $0x1b8] sm:$0xff]
        %v784 = vld [vmem:[#allocation10 + $0x1c0] sm:$0xff]
        %v785 = vld [vmem:[#allocation10 + $0x1c8] sm:$0xff]
        %v786 = vld [vmem:[#allocation10 + $0x1d0] sm:$0xff]
        %v787 = vld [vmem:[#allocation10 + $0x1d8] sm:$0xff]
        %v788 = vld [vmem:[#allocation10 + $0x1e0] sm:$0xff]
        %v789 = vld [vmem:[#allocation10 + $0x1e8] sm:$0xff]
        %v790 = vld [vmem:[#allocation10 + $0x1f0] sm:$0xff]
        %v791 = vld [vmem:[#allocation10 + $0x1f8] sm:$0xff]
        %v792 = vld [vmem:[%s7] sm:$0x3]
        %v794 = vlaneseq
        %v795 = vshrl.u32 %v794, 7
        %v796 = vsub.s32 0, %v795
        %v797 = vrot.slane %v792, %v796
        %v798 = vlaneseq
        %v799 = vshrl.u32 %v798, 7
        %v800 = vsub.s32 1, %v799
        %v801 = vrot.slane %v792, %v800
        %804 = vmatprep.subr.mxu0 %v729
        %805 = vmatpush1.msra.mxu0 %v728
        %806 = vmatprep.subr.mxu0 %v731
        %807 = vmatpush1.msra.mxu0 %v730
        %808 = vmatprep.subr.mxu0 %v733
        %809 = vmatpush1.msra.mxu0 %v732
        %810 = vmatprep.subr.mxu0 %v735
        %811 = vmatpush1.msra.mxu0 %v734
        %812 = vmatprep.subr.mxu0 %v737
        %813 = vmatpush1.msra.mxu0 %v736
        %814 = vmatprep.subr.mxu0 %v739
        %815 = vmatpush1.msra.mxu0 %v738
        %816 = vmatprep.subr.mxu0 %v741
        %817 = vmatpush1.msra.mxu0 %v740
        %818 = vmatprep.subr.mxu0 %v743
        %819 = vmatpush1.msra.mxu0 %v742
        %820 = vmatprep.subr.mxu0 %v745
        %821 = vmatpush1.msra.mxu0 %v744
        %822 = vmatprep.subr.mxu0 %v747
        %823 = vmatpush1.msra.mxu0 %v746
        %824 = vmatprep.subr.mxu0 %v749
        %825 = vmatpush1.msra.mxu0 %v748
        %826 = vmatprep.subr.mxu0 %v751
        %827 = vmatpush1.msra.mxu0 %v750
        %828 = vmatprep.subr.mxu0 %v753
        %829 = vmatpush1.msra.mxu0 %v752
        %830 = vmatprep.subr.mxu0 %v755
        %831 = vmatpush1.msra.mxu0 %v754
        %832 = vmatprep.subr.mxu0 %v757
        %833 = vmatpush1.msra.mxu0 %v756
        %834 = vmatprep.subr.mxu0 %v759
        %835 = vmatpush1.msra.mxu0 %v758
        %836 = vmatprep.subr.mxu0 %v761
        %837 = vmatpush1.msra.mxu0 %v760
        %838 = vmatprep.subr.mxu0 %v763
        %839 = vmatpush1.msra.mxu0 %v762
        %840 = vmatprep.subr.mxu0 %v765
        %841 = vmatpush1.msra.mxu0 %v764
        %842 = vmatprep.subr.mxu0 %v767
        %843 = vmatpush1.msra.mxu0 %v766
        %844 = vmatprep.subr.mxu0 %v769
        %845 = vmatpush1.msra.mxu0 %v768
        %846 = vmatprep.subr.mxu0 %v771
        %847 = vmatpush1.msra.mxu0 %v770
        %848 = vmatprep.subr.mxu0 %v773
        %849 = vmatpush1.msra.mxu0 %v772
        %850 = vmatprep.subr.mxu0 %v775
        %851 = vmatpush1.msra.mxu0 %v774
        %852 = vmatprep.subr.mxu0 %v777
        %853 = vmatpush1.msra.mxu0 %v776
        %854 = vmatprep.subr.mxu0 %v779
        %855 = vmatpush1.msra.mxu0 %v778
        %856 = vmatprep.subr.mxu0 %v781
        %857 = vmatpush1.msra.mxu0 %v780
        %858 = vmatprep.subr.mxu0 %v783
        %859 = vmatpush1.msra.mxu0 %v782
        %860 = vmatprep.subr.mxu0 %v785
        %861 = vmatpush1.msra.mxu0 %v784
        %862 = vmatprep.subr.mxu0 %v787
        %863 = vmatpush1.msra.mxu0 %v786
        %864 = vmatprep.subr.mxu0 %v789
        %865 = vmatpush1.msra.mxu0 %v788
        %866 = vmatprep.subr.mxu0 %v791
        %867 = vmatpush1.msra.mxu0 %v790
        %868 = vmatprep.mubr.f32.mxu0 %v578
        %869 = vmatmul.mubr.f32.gmra.mrb[0].mxu0 %v577
        %v870 = vpop.f32.mrb[0].mxu0
        %v871 = vadd.f32 %v797, %v870
        %v872 = vpop.f32.mrb[0].mxu0
        %v873 = vadd.f32 %v801, %v872
        %874 = vdwg.mxu0
        %v875 = vld [vmem:[#allocation11] sm:$0xff]
        %v876 = vld [vmem:[#allocation11 + $0x8] sm:$0xff]
        %v877 = vld [vmem:[#allocation11 + $0x10] sm:$0xff]
        %v878 = vld [vmem:[#allocation11 + $0x18] sm:$0xff]
        %v879 = vld [vmem:[#allocation11 + $0x20] sm:$0xff]
        %v880 = vld [vmem:[#allocation11 + $0x28] sm:$0xff]
        %v881 = vld [vmem:[#allocation11 + $0x30] sm:$0xff]
        %v882 = vld [vmem:[#allocation11 + $0x38] sm:$0xff]
        %v883 = vld [vmem:[#allocation11 + $0x40] sm:$0xff]
        %v884 = vld [vmem:[#allocation11 + $0x48] sm:$0xff]
        %v885 = vld [vmem:[#allocation11 + $0x50] sm:$0xff]
        %v886 = vld [vmem:[#allocation11 + $0x58] sm:$0xff]
        %v887 = vld [vmem:[#allocation11 + $0x60] sm:$0xff]
        %v888 = vld [vmem:[#allocation11 + $0x68] sm:$0xff]
        %v889 = vld [vmem:[#allocation11 + $0x70] sm:$0xff]
        %v890 = vld [vmem:[#allocation11 + $0x78] sm:$0xff]
        %v891 = vld [vmem:[#allocation11 + $0x80] sm:$0xff]
        %v892 = vld [vmem:[#allocation11 + $0x88] sm:$0xff]
        %v893 = vld [vmem:[#allocation11 + $0x90] sm:$0xff]
        %v894 = vld [vmem:[#allocation11 + $0x98] sm:$0xff]
        %v895 = vld [vmem:[#allocation11 + $0xa0] sm:$0xff]
        %v896 = vld [vmem:[#allocation11 + $0xa8] sm:$0xff]
        %v897 = vld [vmem:[#allocation11 + $0xb0] sm:$0xff]
        %v898 = vld [vmem:[#allocation11 + $0xb8] sm:$0xff]
        %v899 = vld [vmem:[#allocation11 + $0xc0] sm:$0xff]
        %v900 = vld [vmem:[#allocation11 + $0xc8] sm:$0xff]
        %v901 = vld [vmem:[#allocation11 + $0xd0] sm:$0xff]
        %v902 = vld [vmem:[#allocation11 + $0xd8] sm:$0xff]
        %v903 = vld [vmem:[#allocation11 + $0xe0] sm:$0xff]
        %v904 = vld [vmem:[#allocation11 + $0xe8] sm:$0xff]
        %v905 = vld [vmem:[#allocation11 + $0xf0] sm:$0xff]
        %v906 = vld [vmem:[#allocation11 + $0xf8] sm:$0xff]
        %v907 = vld [vmem:[#allocation11 + $0x100] sm:$0xff]
        %v908 = vld [vmem:[#allocation11 + $0x108] sm:$0xff]
        %v909 = vld [vmem:[#allocation11 + $0x110] sm:$0xff]
        %v910 = vld [vmem:[#allocation11 + $0x118] sm:$0xff]
        %v911 = vld [vmem:[#allocation11 + $0x120] sm:$0xff]
        %v912 = vld [vmem:[#allocation11 + $0x128] sm:$0xff]
        %v913 = vld [vmem:[#allocation11 + $0x130] sm:$0xff]
        %v914 = vld [vmem:[#allocation11 + $0x138] sm:$0xff]
        %v915 = vld [vmem:[#allocation11 + $0x140] sm:$0xff]
        %v916 = vld [vmem:[#allocation11 + $0x148] sm:$0xff]
        %v917 = vld [vmem:[#allocation11 + $0x150] sm:$0xff]
        %v918 = vld [vmem:[#allocation11 + $0x158] sm:$0xff]
        %v919 = vld [vmem:[#allocation11 + $0x160] sm:$0xff]
        %v920 = vld [vmem:[#allocation11 + $0x168] sm:$0xff]
        %v921 = vld [vmem:[#allocation11 + $0x170] sm:$0xff]
        %v922 = vld [vmem:[#allocation11 + $0x178] sm:$0xff]
        %v923 = vld [vmem:[#allocation11 + $0x180] sm:$0xff]
        %v924 = vld [vmem:[#allocation11 + $0x188] sm:$0xff]
        %v925 = vld [vmem:[#allocation11 + $0x190] sm:$0xff]
        %v926 = vld [vmem:[#allocation11 + $0x198] sm:$0xff]
        %v927 = vld [vmem:[#allocation11 + $0x1a0] sm:$0xff]
        %v928 = vld [vmem:[#allocation11 + $0x1a8] sm:$0xff]
        %v929 = vld [vmem:[#allocation11 + $0x1b0] sm:$0xff]
        %v930 = vld [vmem:[#allocation11 + $0x1b8] sm:$0xff]
        %v931 = vld [vmem:[#allocation11 + $0x1c0] sm:$0xff]
        %v932 = vld [vmem:[#allocation11 + $0x1c8] sm:$0xff]
        %v933 = vld [vmem:[#allocation11 + $0x1d0] sm:$0xff]
        %v934 = vld [vmem:[#allocation11 + $0x1d8] sm:$0xff]
        %v935 = vld [vmem:[#allocation11 + $0x1e0] sm:$0xff]
        %v936 = vld [vmem:[#allocation11 + $0x1e8] sm:$0xff]
        %v937 = vld [vmem:[#allocation11 + $0x1f0] sm:$0xff]
        %v938 = vld [vmem:[#allocation11 + $0x1f8] sm:$0xff]
        %v939 = vld [vmem:[%s9] sm:$0x3]
        %v941 = vlaneseq
        %v942 = vshrl.u32 %v941, 7
        %v943 = vsub.s32 0, %v942
        %v944 = vrot.slane %v939, %v943
        %v945 = vlaneseq
        %v946 = vshrl.u32 %v945, 7
        %v947 = vsub.s32 1, %v946
        %v948 = vrot.slane %v939, %v947
        %951 = vmatprep.subr.mxu0 %v876
        %952 = vmatpush1.msra.mxu0 %v875
        %953 = vmatprep.subr.mxu0 %v878
        %954 = vmatpush1.msra.mxu0 %v877
        %955 = vmatprep.subr.mxu0 %v880
        %956 = vmatpush1.msra.mxu0 %v879
        %957 = vmatprep.subr.mxu0 %v882
        %958 = vmatpush1.msra.mxu0 %v881
        %959 = vmatprep.subr.mxu0 %v884
        %960 = vmatpush1.msra.mxu0 %v883
        %961 = vmatprep.subr.mxu0 %v886
        %962 = vmatpush1.msra.mxu0 %v885
        %963 = vmatprep.subr.mxu0 %v888
        %964 = vmatpush1.msra.mxu0 %v887
        %965 = vmatprep.subr.mxu0 %v890
        %966 = vmatpush1.msra.mxu0 %v889
        %967 = vmatprep.subr.mxu0 %v892
        %968 = vmatpush1.msra.mxu0 %v891
        %969 = vmatprep.subr.mxu0 %v894
        %970 = vmatpush1.msra.mxu0 %v893
        %971 = vmatprep.subr.mxu0 %v896
        %972 = vmatpush1.msra.mxu0 %v895
        %973 = vmatprep.subr.mxu0 %v898
        %974 = vmatpush1.msra.mxu0 %v897
        %975 = vmatprep.subr.mxu0 %v900
        %976 = vmatpush1.msra.mxu0 %v899
        %977 = vmatprep.subr.mxu0 %v902
        %978 = vmatpush1.msra.mxu0 %v901
        %979 = vmatprep.subr.mxu0 %v904
        %980 = vmatpush1.msra.mxu0 %v903
        %981 = vmatprep.subr.mxu0 %v906
        %982 = vmatpush1.msra.mxu0 %v905
        %983 = vmatprep.subr.mxu0 %v908
        %984 = vmatpush1.msra.mxu0 %v907
        %985 = vmatprep.subr.mxu0 %v910
        %986 = vmatpush1.msra.mxu0 %v909
        %987 = vmatprep.subr.mxu0 %v912
        %988 = vmatpush1.msra.mxu0 %v911
        %989 = vmatprep.subr.mxu0 %v914
        %990 = vmatpush1.msra.mxu0 %v913
        %991 = vmatprep.subr.mxu0 %v916
        %992 = vmatpush1.msra.mxu0 %v915
        %993 = vmatprep.subr.mxu0 %v918
        %994 = vmatpush1.msra.mxu0 %v917
        %995 = vmatprep.subr.mxu0 %v920
        %996 = vmatpush1.msra.mxu0 %v919
        %997 = vmatprep.subr.mxu0 %v922
        %998 = vmatpush1.msra.mxu0 %v921
        %999 = vmatprep.subr.mxu0 %v924
        %1000 = vmatpush1.msra.mxu0 %v923
        %1001 = vmatprep.subr.mxu0 %v926
        %1002 = vmatpush1.msra.mxu0 %v925
        %1003 = vmatprep.subr.mxu0 %v928
        %1004 = vmatpush1.msra.mxu0 %v927
        %1005 = vmatprep.subr.mxu0 %v930
        %1006 = vmatpush1.msra.mxu0 %v929
        %1007 = vmatprep.subr.mxu0 %v932
        %1008 = vmatpush1.msra.mxu0 %v931
        %1009 = vmatprep.subr.mxu0 %v934
        %1010 = vmatpush1.msra.mxu0 %v933
        %1011 = vmatprep.subr.mxu0 %v936
        %1012 = vmatpush1.msra.mxu0 %v935
        %1013 = vmatprep.subr.mxu0 %v938
        %1014 = vmatpush1.msra.mxu0 %v937
        %1015 = vmatprep.mubr.f32.mxu0 %v580
        %1016 = vmatmul.mubr.f32.gmra.mrb[0].mxu0 %v579
        %v1017 = vpop.f32.mrb[0].mxu0
        %v1018 = vadd.f32 %v944, %v1017
        %v1019 = vpop.f32.mrb[0].mxu0
        %v1020 = vadd.f32 %v948, %v1019
        %1021 = vdwg.mxu0
        %v1022 = vld [vmem:[%s574] sm:$0x1]
        %vm1023 = vcmp.eq.s32.totalorder %v1022, 0
        %1024 = vmatprep.subr.mxu0 0.0
        %1025 = vmatpush1.xpose.msra.mxu0 %v871
        %1026 = vmatprep.subr.mxu0 0.0
        %1027 = vmatpush1.xpose.msra.mxu0 0.0
        %1028 = vmatprep.subr.mxu0 0.0
        %1029 = vmatpush1.xpose.msra.mxu0 0.0
        %1030 = vmatprep.subr.mxu0 0.0
        %1031 = vmatpush1.xpose.msra.mxu0 0.0
        %1032 = vmatprep.subr.mxu0 0.0
        %1033 = vmatpush1.xpose.msra.mxu0 0.0
        %1034 = vmatprep.subr.mxu0 0.0
        %1035 = vmatpush1.xpose.msra.mxu0 0.0
        %1036 = vmatprep.subr.mxu0 0.0
        %1037 = vmatpush1.xpose.msra.mxu0 0.0
        %1038 = vmatprep.subr.mxu0 0.0
        %1039 = vmatpush1.xpose.msra.mxu0 0.0
        %1040 = vmatprep.subr.mxu0 0.0
        %1041 = vmatpush1.xpose.msra.mxu0 0.0
        %1042 = vmatprep.subr.mxu0 0.0
        %1043 = vmatpush1.xpose.msra.mxu0 0.0
        %1044 = vmatprep.subr.mxu0 0.0
        %1045 = vmatpush1.xpose.msra.mxu0 0.0
        %1046 = vmatprep.subr.mxu0 0.0
        %1047 = vmatpush1.xpose.msra.mxu0 0.0
        %1048 = vmatprep.subr.mxu0 0.0
        %1049 = vmatpush1.xpose.msra.mxu0 0.0
        %1050 = vmatprep.subr.mxu0 0.0
        %1051 = vmatpush1.xpose.msra.mxu0 0.0
        %1052 = vmatprep.subr.mxu0 0.0
        %1053 = vmatpush1.xpose.msra.mxu0 0.0
        %1054 = vmatprep.subr.mxu0 0.0
        %1055 = vmatpush1.xpose.msra.mxu0 0.0
        %1056 = vmatprep.subr.mxu0 0.0
        %1057 = vmatpush1.xpose.msra.mxu0 0.0
        %1058 = vmatprep.subr.mxu0 0.0
        %1059 = vmatpush1.xpose.msra.mxu0 0.0
        %1060 = vmatprep.subr.mxu0 0.0
        %1061 = vmatpush1.xpose.msra.mxu0 0.0
        %1062 = vmatprep.subr.mxu0 0.0
        %1063 = vmatpush1.xpose.msra.mxu0 0.0
        %1064 = vmatprep.subr.mxu0 0.0
        %1065 = vmatpush1.xpose.msra.mxu0 0.0
        %1066 = vmatprep.subr.mxu0 0.0
        %1067 = vmatpush1.xpose.msra.mxu0 0.0
        %1068 = vmatprep.subr.mxu0 0.0
        %1069 = vmatpush1.xpose.msra.mxu0 0.0
        %1070 = vmatprep.subr.mxu0 0.0
        %1071 = vmatpush1.xpose.msra.mxu0 0.0
        %1072 = vmatprep.subr.mxu0 0.0
        %1073 = vmatpush1.xpose.msra.mxu0 0.0
        %1074 = vmatprep.subr.mxu0 0.0
        %1075 = vmatpush1.xpose.msra.mxu0 0.0
        %1076 = vmatprep.subr.mxu0 0.0
        %1077 = vmatpush1.xpose.msra.mxu0 0.0
        %1078 = vmatprep.subr.mxu0 0.0
        %1079 = vmatpush1.xpose.msra.mxu0 0.0
        %1080 = vmatprep.subr.mxu0 0.0
        %1081 = vmatpush1.xpose.msra.mxu0 0.0
        %1082 = vmatprep.subr.mxu0 0.0
        %1083 = vmatpush1.xpose.msra.mxu0 0.0
        %1084 = vmatprep.subr.mxu0 0.0
        %1085 = vmatpush1.xpose.msra.mxu0 0.0
        %1086 = vmatprep.subr.mxu0 0.0
        %1087 = vmatpush1.xpose.msra.mxu0 0.0
        %1088 = vmatprep.mubr.f32.mxu0 0.0
        %1089 = vmatmul.mubr.f32.gmra.mrb[0].mxu0 %v724
        %v1090 = vpop.f32.mrb[0].mxu0
        %v1091 = vadd.f32 0.0, %v1090
        %v1092 = vpop.f32.mrb[0].mxu0
        %1093 = vdwg.mxu0
        %v1094 = vmul.f32 %v1091, 0.088388346
        %v1095 = vsel %vm1023, 1, 0
        %v1096 = vlaneseq
        %v1097 = vshrl.u32 %v1096, 7
        %v1098 = vsub.s32 0, %v1097
        %v1099 = vrot.slane %v1095, %v1098
        %vm1100 = vcmp.eq.s32.totalorder %v1099, 1
        %v1101 = vsel %vm1100, -1e+09, %v1094
        %vm1102 = vcmask 64512
        %v1103 = vsel %vm1102, %v1101, -inf
        %1104 = vmax.xlane.f32.xlu0 %v1103
        %v1105 = vpop.xlane.xlu0 %1104
        %v1106 = vsub.f32 %v1101, %v1105
        %v1107 = vmul.f32 %v1106, 1.442695
        %v1108 = vpow.pop %v1107
        %v1109 = vsel %vm1102, %v1108, 0.0
        %1110 = vadd.xlane.f32.xlu0 %v1109
        %v1111 = vpop.xlane.xlu0 %1110
        %v1112 = vrcp.pop %v1111
        %v1113 = vmul.f32 %v1108, %v1112
        %v1115 = vsel %vm1102, %v1113, 0
        %1117 = vmatprep.subr.mxu0 0.0
        %1118 = vmatpush1.msra.mxu0 %v1018
        %1119 = vmatprep.subr.mxu0 0.0
        %1120 = vmatpush1.msra.mxu0 0.0
        %1121 = vmatprep.subr.mxu0 0.0
        %1122 = vmatpush1.msra.mxu0 0.0
        %1123 = vmatprep.subr.mxu0 0.0
        %1124 = vmatpush1.msra.mxu0 0.0
        %1125 = vmatprep.subr.mxu0 0.0
        %1126 = vmatpush1.msra.mxu0 0.0
        %1127 = vmatprep.subr.mxu0 0.0
        %1128 = vmatpush1.msra.mxu0 0.0
        %1129 = vmatprep.subr.mxu0 0.0
        %1130 = vmatpush1.msra.mxu0 0.0
        %1131 = vmatprep.subr.mxu0 0.0
        %1132 = vmatpush1.msra.mxu0 0.0
        %1133 = vmatprep.subr.mxu0 0.0
        %1134 = vmatpush1.msra.mxu0 0.0
        %1135 = vmatprep.subr.mxu0 0.0
        %1136 = vmatpush1.msra.mxu0 0.0
        %1137 = vmatprep.subr.mxu0 0.0
        %1138 = vmatpush1.msra.mxu0 0.0
        %1139 = vmatprep.subr.mxu0 0.0
        %1140 = vmatpush1.msra.mxu0 0.0
        %1141 = vmatprep.subr.mxu0 0.0
        %1142 = vmatpush1.msra.mxu0 0.0
        %1143 = vmatprep.subr.mxu0 0.0
        %1144 = vmatpush1.msra.mxu0 0.0
        %1145 = vmatprep.subr.mxu0 0.0
        %1146 = vmatpush1.msra.mxu0 0.0
        %1147 = vmatprep.subr.mxu0 0.0
        %1148 = vmatpush1.msra.mxu0 0.0
        %1149 = vmatprep.subr.mxu0 0.0
        %1150 = vmatpush1.msra.mxu0 0.0
        %1151 = vmatprep.subr.mxu0 0.0
        %1152 = vmatpush1.msra.mxu0 0.0
        %1153 = vmatprep.subr.mxu0 0.0
        %1154 = vmatpush1.msra.mxu0 0.0
        %1155 = vmatprep.subr.mxu0 0.0
        %1156 = vmatpush1.msra.mxu0 0.0
        %1157 = vmatprep.subr.mxu0 0.0
        %1158 = vmatpush1.msra.mxu0 0.0
        %1159 = vmatprep.subr.mxu0 0.0
        %1160 = vmatpush1.msra.mxu0 0.0
        %1161 = vmatprep.subr.mxu0 0.0
        %1162 = vmatpush1.msra.mxu0 0.0
        %1163 = vmatprep.subr.mxu0 0.0
        %1164 = vmatpush1.msra.mxu0 0.0
        %1165 = vmatprep.subr.mxu0 0.0
        %1166 = vmatpush1.msra.mxu0 0.0
        %1167 = vmatprep.subr.mxu0 0.0
        %1168 = vmatpush1.msra.mxu0 0.0
        %1169 = vmatprep.subr.mxu0 0.0
        %1170 = vmatpush1.msra.mxu0 0.0
        %1171 = vmatprep.subr.mxu0 0.0
        %1172 = vmatpush1.msra.mxu0 0.0
        %1173 = vmatprep.subr.mxu0 0.0
        %1174 = vmatpush1.msra.mxu0 0.0
        %1175 = vmatprep.subr.mxu0 0.0
        %1176 = vmatpush1.msra.mxu0 0.0
        %1177 = vmatprep.subr.mxu0 0.0
        %1178 = vmatpush1.msra.mxu0 0.0
        %1179 = vmatprep.subr.mxu0 0.0
        %1180 = vmatpush1.msra.mxu0 0.0
        %1181 = vmatprep.mubr.f32.mxu0 0.0
        %1182 = vmatmul.mubr.f32.gmra.mrb[0].mxu0 %v1115
        %v1183 = vpop.f32.mrb[0].mxu0
        %v1184 = vadd.f32 0.0, %v1183
        %v1185 = vpop.f32.mrb[0].mxu0
        %1186 = vdwg.mxu0
        %1187 = vmatprep.subr.mxu0 0.0
        %1188 = vmatpush1.xpose.msra.mxu0 %v873
        %1189 = vmatprep.subr.mxu0 0.0
        %1190 = vmatpush1.xpose.msra.mxu0 0.0
        %1191 = vmatprep.subr.mxu0 0.0
        %1192 = vmatpush1.xpose.msra.mxu0 0.0
        %1193 = vmatprep.subr.mxu0 0.0
        %1194 = vmatpush1.xpose.msra.mxu0 0.0
        %1195 = vmatprep.subr.mxu0 0.0
        %1196 = vmatpush1.xpose.msra.mxu0 0.0
        %1197 = vmatprep.subr.mxu0 0.0
        %1198 = vmatpush1.xpose.msra.mxu0 0.0
        %1199 = vmatprep.subr.mxu0 0.0
        %1200 = vmatpush1.xpose.msra.mxu0 0.0
        %1201 = vmatprep.subr.mxu0 0.0
        %1202 = vmatpush1.xpose.msra.mxu0 0.0
        %1203 = vmatprep.subr.mxu0 0.0
        %1204 = vmatpush1.xpose.msra.mxu0 0.0
        %1205 = vmatprep.subr.mxu0 0.0
        %1206 = vmatpush1.xpose.msra.mxu0 0.0
        %1207 = vmatprep.subr.mxu0 0.0
        %1208 = vmatpush1.xpose.msra.mxu0 0.0
        %1209 = vmatprep.subr.mxu0 0.0
        %1210 = vmatpush1.xpose.msra.mxu0 0.0
        %1211 = vmatprep.subr.mxu0 0.0
        %1212 = vmatpush1.xpose.msra.mxu0 0.0
        %1213 = vmatprep.subr.mxu0 0.0
        %1214 = vmatpush1.xpose.msra.mxu0 0.0
        %1215 = vmatprep.subr.mxu0 0.0
        %1216 = vmatpush1.xpose.msra.mxu0 0.0
        %1217 = vmatprep.subr.mxu0 0.0
        %1218 = vmatpush1.xpose.msra.mxu0 0.0
        %1219 = vmatprep.subr.mxu0 0.0
        %1220 = vmatpush1.xpose.msra.mxu0 0.0
        %1221 = vmatprep.subr.mxu0 0.0
        %1222 = vmatpush1.xpose.msra.mxu0 0.0
        %1223 = vmatprep.subr.mxu0 0.0
        %1224 = vmatpush1.xpose.msra.mxu0 0.0
        %1225 = vmatprep.subr.mxu0 0.0
        %1226 = vmatpush1.xpose.msra.mxu0 0.0
        %1227 = vmatprep.subr.mxu0 0.0
        %1228 = vmatpush1.xpose.msra.mxu0 0.0
        %1229 = vmatprep.subr.mxu0 0.0
        %1230 = vmatpush1.xpose.msra.mxu0 0.0
        %1231 = vmatprep.subr.mxu0 0.0
        %1232 = vmatpush1.xpose.msra.mxu0 0.0
        %1233 = vmatprep.subr.mxu0 0.0
        %1234 = vmatpush1.xpose.msra.mxu0 0.0
        %1235 = vmatprep.subr.mxu0 0.0
        %1236 = vmatpush1.xpose.msra.mxu0 0.0
        %1237 = vmatprep.subr.mxu0 0.0
        %1238 = vmatpush1.xpose.msra.mxu0 0.0
        %1239 = vmatprep.subr.mxu0 0.0
        %1240 = vmatpush1.xpose.msra.mxu0 0.0
        %1241 = vmatprep.subr.mxu0 0.0
        %1242 = vmatpush1.xpose.msra.mxu0 0.0
        %1243 = vmatprep.subr.mxu0 0.0
        %1244 = vmatpush1.xpose.msra.mxu0 0.0
        %1245 = vmatprep.subr.mxu0 0.0
        %1246 = vmatpush1.xpose.msra.mxu0 0.0
        %1247 = vmatprep.subr.mxu0 0.0
        %1248 = vmatpush1.xpose.msra.mxu0 0.0
        %1249 = vmatprep.subr.mxu0 0.0
        %1250 = vmatpush1.xpose.msra.mxu0 0.0
        %1251 = vmatprep.mubr.f32.mxu0 0.0
        %1252 = vmatmul.mubr.f32.gmra.mrb[0].mxu0 %v726
        %v1253 = vpop.f32.mrb[0].mxu0
        %v1254 = vadd.f32 0.0, %v1253
        %v1255 = vpop.f32.mrb[0].mxu0
        %1256 = vdwg.mxu0
        %v1257 = vmul.f32 %v1254, 0.088388346
        %v1258 = vsel %vm1100, -1e+09, %v1257
        %v1259 = vsel %vm1102, %v1258, -inf
        %1260 = vmax.xlane.f32.xlu0 %v1259
        %v1261 = vpop.xlane.xlu0 %1260
        %v1262 = vsub.f32 %v1258, %v1261
        %v1263 = vmul.f32 %v1262, 1.442695
        %v1264 = vpow.pop %v1263
        %v1265 = vsel %vm1102, %v1264, 0.0
        %1266 = vadd.xlane.f32.xlu0 %v1265
        %v1267 = vpop.xlane.xlu0 %1266
        %v1268 = vrcp.pop %v1267
        %v1269 = vmul.f32 %v1264, %v1268
        %v1271 = vsel %vm1102, %v1269, 0
        %1273 = vmatprep.subr.mxu0 0.0
        %1274 = vmatpush1.msra.mxu0 %v1020
        %1275 = vmatprep.subr.mxu0 0.0
        %1276 = vmatpush1.msra.mxu0 0.0
        %1277 = vmatprep.subr.mxu0 0.0
        %1278 = vmatpush1.msra.mxu0 0.0
        %1279 = vmatprep.subr.mxu0 0.0
        %1280 = vmatpush1.msra.mxu0 0.0
        %1281 = vmatprep.subr.mxu0 0.0
        %1282 = vmatpush1.msra.mxu0 0.0
        %1283 = vmatprep.subr.mxu0 0.0
        %1284 = vmatpush1.msra.mxu0 0.0
        %1285 = vmatprep.subr.mxu0 0.0
        %1286 = vmatpush1.msra.mxu0 0.0
        %1287 = vmatprep.subr.mxu0 0.0
        %1288 = vmatpush1.msra.mxu0 0.0
        %1289 = vmatprep.subr.mxu0 0.0
        %1290 = vmatpush1.msra.mxu0 0.0
        %1291 = vmatprep.subr.mxu0 0.0
        %1292 = vmatpush1.msra.mxu0 0.0
        %1293 = vmatprep.subr.mxu0 0.0
        %1294 = vmatpush1.msra.mxu0 0.0
        %1295 = vmatprep.subr.mxu0 0.0
        %1296 = vmatpush1.msra.mxu0 0.0
        %1297 = vmatprep.subr.mxu0 0.0
        %1298 = vmatpush1.msra.mxu0 0.0
        %1299 = vmatprep.subr.mxu0 0.0
        %1300 = vmatpush1.msra.mxu0 0.0
        %1301 = vmatprep.subr.mxu0 0.0
        %1302 = vmatpush1.msra.mxu0 0.0
        %1303 = vmatprep.subr.mxu0 0.0
        %1304 = vmatpush1.msra.mxu0 0.0
        %1305 = vmatprep.subr.mxu0 0.0
        %1306 = vmatpush1.msra.mxu0 0.0
        %1307 = vmatprep.subr.mxu0 0.0
        %1308 = vmatpush1.msra.mxu0 0.0
        %1309 = vmatprep.subr.mxu0 0.0
        %1310 = vmatpush1.msra.mxu0 0.0
        %1311 = vmatprep.subr.mxu0 0.0
        %1312 = vmatpush1.msra.mxu0 0.0
        %1313 = vmatprep.subr.mxu0 0.0
        %1314 = vmatpush1.msra.mxu0 0.0
        %1315 = vmatprep.subr.mxu0 0.0
        %1316 = vmatpush1.msra.mxu0 0.0
        %1317 = vmatprep.subr.mxu0 0.0
        %1318 = vmatpush1.msra.mxu0 0.0
        %1319 = vmatprep.subr.mxu0 0.0
        %1320 = vmatpush1.msra.mxu0 0.0
        %1321 = vmatprep.subr.mxu0 0.0
        %1322 = vmatpush1.msra.mxu0 0.0
        %1323 = vmatprep.subr.mxu0 0.0
        %1324 = vmatpush1.msra.mxu0 0.0
        %1325 = vmatprep.subr.mxu0 0.0
        %1326 = vmatpush1.msra.mxu0 0.0
        %1327 = vmatprep.subr.mxu0 0.0
        %1328 = vmatpush1.msra.mxu0 0.0
        %1329 = vmatprep.subr.mxu0 0.0
        %1330 = vmatpush1.msra.mxu0 0.0
        %1331 = vmatprep.subr.mxu0 0.0
        %1332 = vmatpush1.msra.mxu0 0.0
        %1333 = vmatprep.subr.mxu0 0.0
        %1334 = vmatpush1.msra.mxu0 0.0
        %1335 = vmatprep.subr.mxu0 0.0
        %1336 = vmatpush1.msra.mxu0 0.0
        %1337 = vmatprep.mubr.f32.mxu0 0.0
        %1338 = vmatmul.mubr.f32.gmra.mrb[0].mxu0 %v1271
        %v1339 = vpop.f32.mrb[0].mxu0
        %v1340 = vadd.f32 0.0, %v1339
        %v1341 = vpop.f32.mrb[0].mxu0
        %1342 = vdwg.mxu0
        %v1343 = vld [vmem:[#allocation13] sm:$0xff]
        %v1344 = vld [vmem:[#allocation13 + $0x8] sm:$0xff]
        %v1345 = vld [vmem:[#allocation13 + $0x10] sm:$0xff]
        %v1346 = vld [vmem:[#allocation13 + $0x18] sm:$0xff]
        %v1347 = vld [vmem:[#allocation13 + $0x20] sm:$0xff]
        %v1348 = vld [vmem:[#allocation13 + $0x28] sm:$0xff]
        %v1349 = vld [vmem:[#allocation13 + $0x30] sm:$0xff]
        %v1350 = vld [vmem:[#allocation13 + $0x38] sm:$0xff]
        %v1351 = vld [vmem:[#allocation13 + $0x40] sm:$0xff]
        %v1352 = vld [vmem:[#allocation13 + $0x48] sm:$0xff]
        %v1353 = vld [vmem:[#allocation13 + $0x50] sm:$0xff]
        %v1354 = vld [vmem:[#allocation13 + $0x58] sm:$0xff]
        %v1355 = vld [vmem:[#allocation13 + $0x60] sm:$0xff]
        %v1356 = vld [vmem:[#allocation13 + $0x68] sm:$0xff]
        %v1357 = vld [vmem:[#allocation13 + $0x70] sm:$0xff]
        %v1358 = vld [vmem:[#allocation13 + $0x78] sm:$0xff]
        %v1359 = vld [vmem:[#allocation13 + $0x80] sm:$0xff]
        %v1360 = vld [vmem:[#allocation13 + $0x88] sm:$0xff]
        %v1361 = vld [vmem:[#allocation13 + $0x90] sm:$0xff]
        %v1362 = vld [vmem:[#allocation13 + $0x98] sm:$0xff]
        %v1363 = vld [vmem:[#allocation13 + $0xa0] sm:$0xff]
        %v1364 = vld [vmem:[#allocation13 + $0xa8] sm:$0xff]
        %v1365 = vld [vmem:[#allocation13 + $0xb0] sm:$0xff]
        %v1366 = vld [vmem:[#allocation13 + $0xb8] sm:$0xff]
        %v1367 = vld [vmem:[#allocation13 + $0xc0] sm:$0xff]
        %v1368 = vld [vmem:[#allocation13 + $0xc8] sm:$0xff]
        %v1369 = vld [vmem:[#allocation13 + $0xd0] sm:$0xff]
        %v1370 = vld [vmem:[#allocation13 + $0xd8] sm:$0xff]
        %v1371 = vld [vmem:[#allocation13 + $0xe0] sm:$0xff]
        %v1372 = vld [vmem:[#allocation13 + $0xe8] sm:$0xff]
        %v1373 = vld [vmem:[#allocation13 + $0xf0] sm:$0xff]
        %v1374 = vld [vmem:[#allocation13 + $0xf8] sm:$0xff]
        %v1375 = vld [vmem:[#allocation13 + $0x100] sm:$0xff]
        %v1376 = vld [vmem:[#allocation13 + $0x108] sm:$0xff]
        %v1377 = vld [vmem:[#allocation13 + $0x110] sm:$0xff]
        %v1378 = vld [vmem:[#allocation13 + $0x118] sm:$0xff]
        %v1379 = vld [vmem:[#allocation13 + $0x120] sm:$0xff]
        %v1380 = vld [vmem:[#allocation13 + $0x128] sm:$0xff]
        %v1381 = vld [vmem:[#allocation13 + $0x130] sm:$0xff]
        %v1382 = vld [vmem:[#allocation13 + $0x138] sm:$0xff]
        %v1383 = vld [vmem:[#allocation13 + $0x140] sm:$0xff]
        %v1384 = vld [vmem:[#allocation13 + $0x148] sm:$0xff]
        %v1385 = vld [vmem:[#allocation13 + $0x150] sm:$0xff]
        %v1386 = vld [vmem:[#allocation13 + $0x158] sm:$0xff]
        %v1387 = vld [vmem:[#allocation13 + $0x160] sm:$0xff]
        %v1388 = vld [vmem:[#allocation13 + $0x168] sm:$0xff]
        %v1389 = vld [vmem:[#allocation13 + $0x170] sm:$0xff]
        %v1390 = vld [vmem:[#allocation13 + $0x178] sm:$0xff]
        %v1391 = vld [vmem:[#allocation13 + $0x180] sm:$0xff]
        %v1392 = vld [vmem:[#allocation13 + $0x188] sm:$0xff]
        %v1393 = vld [vmem:[#allocation13 + $0x190] sm:$0xff]
        %v1394 = vld [vmem:[#allocation13 + $0x198] sm:$0xff]
        %v1395 = vld [vmem:[#allocation13 + $0x1a0] sm:$0xff]
        %v1396 = vld [vmem:[#allocation13 + $0x1a8] sm:$0xff]
        %v1397 = vld [vmem:[#allocation13 + $0x1b0] sm:$0xff]
        %v1398 = vld [vmem:[#allocation13 + $0x1b8] sm:$0xff]
        %v1399 = vld [vmem:[#allocation13 + $0x1c0] sm:$0xff]
        %v1400 = vld [vmem:[#allocation13 + $0x1c8] sm:$0xff]
        %v1401 = vld [vmem:[#allocation13 + $0x1d0] sm:$0xff]
        %v1402 = vld [vmem:[#allocation13 + $0x1d8] sm:$0xff]
        %v1403 = vld [vmem:[#allocation13 + $0x1e0] sm:$0xff]
        %v1404 = vld [vmem:[#allocation13 + $0x1e8] sm:$0xff]
        %v1405 = vld [vmem:[#allocation13 + $0x1f0] sm:$0xff]
        %v1406 = vld [vmem:[#allocation13 + $0x1f8] sm:$0xff]
        %v1407 = vld [vmem:[%s11] sm:$0x3]
        %v1409 = vlaneseq
        %v1410 = vshrl.u32 %v1409, 7
        %v1411 = vsub.s32 0, %v1410
        %v1412 = vrot.slane %v1407, %v1411
        %v1413 = vlaneseq
        %v1414 = vshrl.u32 %v1413, 7
        %v1415 = vsub.s32 1, %v1414
        %v1416 = vrot.slane %v1407, %v1415
        %1419 = vmatprep.subr.mxu0 %v1344
        %1420 = vmatpush1.msra.mxu0 %v1343
        %1421 = vmatprep.subr.mxu0 %v1346
        %1422 = vmatpush1.msra.mxu0 %v1345
        %1423 = vmatprep.subr.mxu0 %v1348
        %1424 = vmatpush1.msra.mxu0 %v1347
        %1425 = vmatprep.subr.mxu0 %v1350
        %1426 = vmatpush1.msra.mxu0 %v1349
        %1427 = vmatprep.subr.mxu0 %v1352
        %1428 = vmatpush1.msra.mxu0 %v1351
        %1429 = vmatprep.subr.mxu0 %v1354
        %1430 = vmatpush1.msra.mxu0 %v1353
        %1431 = vmatprep.subr.mxu0 %v1356
        %1432 = vmatpush1.msra.mxu0 %v1355
        %1433 = vmatprep.subr.mxu0 %v1358
        %1434 = vmatpush1.msra.mxu0 %v1357
        %1435 = vmatprep.subr.mxu0 %v1360
        %1436 = vmatpush1.msra.mxu0 %v1359
        %1437 = vmatprep.subr.mxu0 %v1362
        %1438 = vmatpush1.msra.mxu0 %v1361
        %1439 = vmatprep.subr.mxu0 %v1364
        %1440 = vmatpush1.msra.mxu0 %v1363
        %1441 = vmatprep.subr.mxu0 %v1366
        %1442 = vmatpush1.msra.mxu0 %v1365
        %1443 = vmatprep.subr.mxu0 %v1368
        %1444 = vmatpush1.msra.mxu0 %v1367
        %1445 = vmatprep.subr.mxu0 %v1370
        %1446 = vmatpush1.msra.mxu0 %v1369
        %1447 = vmatprep.subr.mxu0 %v1372
        %1448 = vmatpush1.msra.mxu0 %v1371
        %1449 = vmatprep.subr.mxu0 %v1374
        %1450 = vmatpush1.msra.mxu0 %v1373
        %1451 = vmatprep.subr.mxu0 %v1376
        %1452 = vmatpush1.msra.mxu0 %v1375
        %1453 = vmatprep.subr.mxu0 %v1378
        %1454 = vmatpush1.msra.mxu0 %v1377
        %1455 = vmatprep.subr.mxu0 %v1380
        %1456 = vmatpush1.msra.mxu0 %v1379
        %1457 = vmatprep.subr.mxu0 %v1382
        %1458 = vmatpush1.msra.mxu0 %v1381
        %1459 = vmatprep.subr.mxu0 %v1384
        %1460 = vmatpush1.msra.mxu0 %v1383
        %1461 = vmatprep.subr.mxu0 %v1386
        %1462 = vmatpush1.msra.mxu0 %v1385
        %1463 = vmatprep.subr.mxu0 %v1388
        %1464 = vmatpush1.msra.mxu0 %v1387
        %1465 = vmatprep.subr.mxu0 %v1390
        %1466 = vmatpush1.msra.mxu0 %v1389
        %1467 = vmatprep.subr.mxu0 %v1392
        %1468 = vmatpush1.msra.mxu0 %v1391
        %1469 = vmatprep.subr.mxu0 %v1394
        %1470 = vmatpush1.msra.mxu0 %v1393
        %1471 = vmatprep.subr.mxu0 %v1396
        %1472 = vmatpush1.msra.mxu0 %v1395
        %1473 = vmatprep.subr.mxu0 %v1398
        %1474 = vmatpush1.msra.mxu0 %v1397
        %1475 = vmatprep.subr.mxu0 %v1400
        %1476 = vmatpush1.msra.mxu0 %v1399
        %1477 = vmatprep.subr.mxu0 %v1402
        %1478 = vmatpush1.msra.mxu0 %v1401
        %1479 = vmatprep.subr.mxu0 %v1404
        %1480 = vmatpush1.msra.mxu0 %v1403
        %1481 = vmatprep.subr.mxu0 %v1406
        %1482 = vmatpush1.msra.mxu0 %v1405
        %1483 = vmatprep.mubr.f32.mxu0 %v1340
        %1484 = vmatmul.mubr.f32.gmra.mrb[0].mxu0 %v1184
        %v1485 = vpop.f32.mrb[0].mxu0
        %v1486 = vadd.f32 %v1412, %v1485
        %v1487 = vpop.f32.mrb[0].mxu0
        %v1488 = vadd.f32 %v1416, %v1487
        %1489 = vdwg.mxu0
        %1490 = vst [vmem:[%s571] sm:$0xff] %v1486
        %1491 = vst [vmem:[%s571 + $0x8] sm:$0xff] %v1488
        %s1492 = sand.u32 %s314, 1
        %s1493 = scalar_lea.sflag [#allocation4], %s1492
        %s1494 = sand.u32 %s314, 1
        %s1495 = smul.addr %s1494, 16
        %s1496 = scalar_lea.vmem [#allocation14], %s1495
        // Predicated region
        $region97: #{tpu_custom_call.1} parent=67 // pred_check
          %p1497 = pneg %p324
        $region98: #{tpu_custom_call.1} parent=67 // pred_check_branch
          %1499 = sbr.rel (%p1497) target = $region100
        $region99: #{tpu_custom_call.1} parent=67 // pred_region
          %s1501 = ssub.s32 256, 256
          %1502 = vsyncadd %s1493, %s1501
          %s1503 = smul.addr %s34, 2
          %s1504 = smul.addr %s1503, 128
          %s1505 = scalar_lea.hbm %s12, %s1504
          %s1507 = sshll.u32 %s1496, 4
          %s1508 = int_to_ptr.vmem [resolvable:$true] %s1507
          %1510 = dma.vmem_to_hbm [thread:$0]  %s1508, 256, %s1505, %s1493
        $region100: #{tpu_custom_call.1} parent=67 // pred_fallthru
          _
      $region68: #{tpu_custom_call.1} parent=5 // pred_fallthru
        _
      %p1511 = scmp.le.s32.totalorder 2, %s29
      // Predicated region
      $region101: #{tpu_custom_call.1} parent=5 // pred_check
        %p1512 = pneg %p1511
      $region102: #{tpu_custom_call.1} parent=5 // pred_check_branch
        %1514 = sbr.rel (%p1512) target = $region104
      $region103: #{tpu_custom_call.1} parent=5 // pred_region
        %s1515 = ssub.s32 %s29, 2
        // Predicated region
        $region105: #{tpu_custom_call.1} parent=103 // pred_check
          %p1516 = pneg %p330
        $region106: #{tpu_custom_call.1} parent=103 // pred_check_branch
          %1518 = sbr.rel (%p1516) target = $region108
        $region107: #{tpu_custom_call.1} parent=103 // pred_region
          %s1519 = sand.u32 %s315, 1
          %s1520 = scalar_lea.sflag [#allocation4], %s1519
          %s1521 = sand.u32 %s315, 1
          %s1522 = smul.addr %s1521, 16
          %s1523 = scalar_lea.vmem [#allocation14], %s1522
          %1524 = dma.done %s1520, 256
        $region108: #{tpu_custom_call.1} parent=103 // pred_fallthru
          _
      $region104: #{tpu_custom_call.1} parent=5 // pred_fallthru
        _
    $region6: #{tpu_custom_call.1} parent=1 // loop_footer
      %s33 = sadd.s32 1, %s29
    $region7: #{tpu_custom_call.1} parent=1 // loop_footer_branch
      %28 = sbr.rel target = $region3
    $region8: #{tpu_custom_call.1} parent=1 // loop_exit
      _
    %1525 = vsyncpa [#allocation3], 1
    %s1526 = scalar_lea.sflag [#allocation3], 1
    %1527 = vsyncpa %s1526, 1
    %1528 = vsyncpa [#allocation6], 1
    %s1529 = scalar_lea.sflag [#allocation6], 1
    %1530 = vsyncpa %s1529, 1
    %1531 = vsyncpa [#allocation9], 1
    %1532 = vsyncpa [#allocation12], 1
    %1533 = vsyncpa [#allocation4], 1
    %s1534 = scalar_lea.sflag [#allocation4], 1
    %1535 = vsyncpa %s1534, 1

</llo_original>
